<compile_context>
chip_gen: v7x
topology: tpu7x:2x2x1
jax: 0.10.0
libtpu: 0.0.40
codegen_flags: <defaults>
</compile_context>

<pallas_src>
import functools

import jax
import jax.numpy as jnp
from jax.experimental import pallas as pl
from jax.experimental.pallas import tpu as pltpu


# ----------------------------------------------------------------------------
# Fused kernel: multi-layer LSTM + (ReLU -> Linear -> ReLU -> Linear) head
# ----------------------------------------------------------------------------
def _fused_lstm_fc_kernel(x_ref,        # (T*B, D)        bf16, time-major flat
                          wih0_ref,     # (D, 4H)         bf16, layer 0 input proj
                          wih_r_ref,    # (max(L-1,1), H, 4H) bf16, layers >= 1
                          whh_ref,      # (L, H, 4H)      bf16, recurrent weights
                          bias_ref,     # (L, 1, 4H)      f32, b_ih + b_hh
                          w1_ref,       # (H, 2H)         bf16
                          b1_ref,       # (1, 2H)         f32
                          w2_ref,       # (2H, out)       bf16
                          b2_ref,       # (1, out)        f32
                          o_ref,        # (B, out)        f32
                          gx_scr,       # (T*B, 4H)       f32 scratch: hoisted x-proj
                          y_scr,        # (T*B, H)        f32 scratch: inter-layer acts
                          *, seq_len, batch, num_layers):
    T, B = seq_len, batch
    H = whh_ref.shape[1]

    h = None
    for layer in range(num_layers):
        # ---- Hoisted input projection for all T timesteps (one big matmul).
        # Bias (b_ih + b_hh) is folded in here, off the serial critical path.
        if layer == 0:
            layer_in = x_ref[...]                          # (T*B, D) bf16
            w_in = wih0_ref[...]                           # (D, 4H)  bf16
        else:
            layer_in = y_scr[...].astype(jnp.bfloat16)     # (T*B, H) bf16
            w_in = wih_r_ref[layer - 1]                    # (H, 4H)  bf16
        gx_scr[...] = (
            jnp.dot(layer_in, w_in, preferred_element_type=jnp.float32)
            + bias_ref[layer])                             # (1,4H) broadcast

        # ---- Serial recurrence: only h @ W_hh + precomputed gates_x[t].
        whh = whh_ref[layer]                               # (H, 4H) bf16
        h = jnp.zeros((B, H), jnp.float32)
        c = jnp.zeros((B, H), jnp.float32)
        for t in range(T):                                 # static, fully unrolled
            gates = (
                jnp.dot(h.astype(jnp.bfloat16), whh,
                        preferred_element_type=jnp.float32)
                + gx_scr[t * B:(t + 1) * B, :])            # (B, 4H)
            # PyTorch gate order: [i, f, g, o]
            i_g = jax.nn.sigmoid(gates[:, 0 * H:1 * H])
            f_g = jax.nn.sigmoid(gates[:, 1 * H:2 * H])
            g_g = jnp.tanh(gates[:, 2 * H:3 * H])
            o_g = jax.nn.sigmoid(gates[:, 3 * H:4 * H])
            c = f_g * c + i_g * g_g
            h = o_g * jnp.tanh(c)
            if layer < num_layers - 1:
                y_scr[t * B:(t + 1) * B, :] = h            # feed next layer (VMEM only)

    # ---- FC head on the last hidden state of the top layer only.
    # (The reference applies fc per-timestep then takes [:, -1, :];
    #  fc has no cross-timestep interaction, so this is identical.)
    z = jnp.maximum(h, 0.0)
    z = jnp.dot(z.astype(jnp.bfloat16), w1_ref[...],
                preferred_element_type=jnp.float32) + b1_ref[...]
    z = jnp.maximum(z, 0.0)
    y = jnp.dot(z.astype(jnp.bfloat16), w2_ref[...],
                preferred_element_type=jnp.float32) + b2_ref[...]
    o_ref[...] = y.astype(o_ref.dtype)


# ----------------------------------------------------------------------------
# Wrapper
# ----------------------------------------------------------------------------
@functools.partial(jax.jit, static_argnames=("num_layers",))
def lstm_forward(x, params, *, num_layers):
    """Full forward: multi-layer LSTM + FC head; returns (B, out_dim).

    x: (B, T, inp_dim) — batch_first, matching the PyTorch module.
    """
    B, T, D = x.shape
    lp = params["lstm"]
    H = lp[0]["w_hh"].shape[1]
    H4 = 4 * H
    fp = params["fc"]
    H2 = fp["w1"].shape[0]
    out_dim = fp["w2"].shape[0]

    # Time-major, flattened over (t, b): row t*B + b == x[b, t, :].
    x_flat = (jnp.transpose(x, (1, 0, 2))
              .reshape(T * B, D)
              .astype(jnp.bfloat16))

    wih0 = jnp.transpose(lp[0]["w_ih"]).astype(jnp.bfloat16)            # (D, 4H)
    if num_layers > 1:
        wih_rest = jnp.stack(
            [jnp.transpose(lp[l]["w_ih"]) for l in range(1, num_layers)]
        ).astype(jnp.bfloat16)                                          # (L-1, H, 4H)
    else:
        wih_rest = jnp.zeros((1, H, H4), jnp.bfloat16)                  # unused dummy
    whh = jnp.stack(
        [jnp.transpose(lp[l]["w_hh"]) for l in range(num_layers)]
    ).astype(jnp.bfloat16)                                              # (L, H, 4H)
    bias = jnp.stack(
        [(lp[l]["b_ih"] + lp[l]["b_hh"]).reshape(1, H4)
         for l in range(num_layers)]
    ).astype(jnp.float32)                                               # (L, 1, 4H)

    w1 = jnp.transpose(fp["w1"]).astype(jnp.bfloat16)                   # (H, 2H)
    b1 = fp["b1"].astype(jnp.float32).reshape(1, H2)
    w2 = jnp.transpose(fp["w2"]).astype(jnp.bfloat16)                   # (2H, out)
    b2 = fp["b2"].astype(jnp.float32).reshape(1, out_dim)

    Lm1 = wih_rest.shape[0]

    kernel = functools.partial(
        _fused_lstm_fc_kernel, seq_len=T, batch=B, num_layers=num_layers)

    return pl.pallas_call(
        kernel,
        out_shape=jax.ShapeDtypeStruct((B, out_dim), jnp.float32),
        in_specs=[
            pl.BlockSpec((T * B, D), lambda: (0, 0)),
            pl.BlockSpec((D, H4), lambda: (0, 0)),
            pl.BlockSpec((Lm1, H, H4), lambda: (0, 0, 0)),
            pl.BlockSpec((num_layers, H, H4), lambda: (0, 0, 0)),
            pl.BlockSpec((num_layers, 1, H4), lambda: (0, 0, 0)),
            pl.BlockSpec((H, H2), lambda: (0, 0)),
            pl.BlockSpec((1, H2), lambda: (0, 0)),
            pl.BlockSpec((H2, out_dim), lambda: (0, 0)),
            pl.BlockSpec((1, out_dim), lambda: (0, 0)),
        ],
        out_specs=pl.BlockSpec((B, out_dim), lambda: (0, 0)),
        scratch_shapes=[
            pltpu.VMEM((T * B, H4), jnp.float32),   # hoisted input projections
            pltpu.VMEM((T * B, H), jnp.float32),    # inter-layer activations
        ],
        compiler_params=pltpu.CompilerParams(
            # Tiny at these shapes; raise further if H/T grow (defaults are
            # 16 MiB on v5e, 32 MiB on v6e/v7x).
            vmem_limit_bytes=32 * 1024 * 1024,
        ),
    )(x_flat, wih0, wih_rest, whh, bias, w1, b1, w2, b2)


# ----------------------------------------------------------------------------
# Deterministic parameter init (PyTorch-style uniform ranges)
# ----------------------------------------------------------------------------
def init_params(key, inp_dim, hid_dim, out_dim, num_layers):
    params = {"lstm": [], "fc": {}}
    k_lstm = 1.0 / jnp.sqrt(hid_dim)
    for layer in range(num_layers):
        d_in = inp_dim if layer == 0 else hid_dim
        key, k1, k2, k3, k4 = jax.random.split(key, 5)
        params["lstm"].append({
            "w_ih": jax.random.uniform(k1, (4 * hid_dim, d_in),
                                       minval=-k_lstm, maxval=k_lstm),
            "w_hh": jax.random.uniform(k2, (4 * hid_dim, hid_dim),
                                       minval=-k_lstm, maxval=k_lstm),
            "b_ih": jax.random.uniform(k3, (4 * hid_dim,),
                                       minval=-k_lstm, maxval=k_lstm),
            "b_hh": jax.random.uniform(k4, (4 * hid_dim,),
                                       minval=-k_lstm, maxval=k_lstm),
        })
    key, k1, k2, k3, k4 = jax.random.split(key, 5)
    k_fc1 = 1.0 / jnp.sqrt(hid_dim)
    k_fc2 = 1.0 / jnp.sqrt(2 * hid_dim)
    params["fc"] = {
        "w1": jax.random.uniform(k1, (2 * hid_dim, hid_dim),
                                 minval=-k_fc1, maxval=k_fc1),
        "b1": jax.random.uniform(k2, (2 * hid_dim,),
                                 minval=-k_fc1, maxval=k_fc1),
        "w2": jax.random.uniform(k3, (out_dim, 2 * hid_dim),
                                 minval=-k_fc2, maxval=k_fc2),
        "b2": jax.random.uniform(k4, (out_dim,),
                                 minval=-k_fc2, maxval=k_fc2),
    }
    return params


if __name__ == "__main__":
    batch, seq, inp_dim, hid_dim, out_dim, layers = 2, 8, 16, 32, 8, 2

    key = jax.random.PRNGKey(0)
    key, kx = jax.random.split(key)
    x = jax.random.normal(kx, (batch, seq, inp_dim), dtype=jnp.float32)
    params = init_params(key, inp_dim, hid_dim, out_dim, layers)

    out = lstm_forward(x, params, num_layers=layers)
    jax.block_until_ready(out)
    assert out.shape == (batch, out_dim), out.shape
    print("KERNEL_OK")
</pallas_src>

<mosaic_0001>
module attributes {stable_mosaic.version = 11 : i64} {
  func.func @_fused_lstm_fc_kernel(%arg0: memref<16x16xbf16, #tpu.memory_space<vmem>>, %arg1: memref<16x128xbf16, #tpu.memory_space<vmem>>, %arg2: memref<1x32x128xbf16, #tpu.memory_space<vmem>>, %arg3: memref<2x32x128xbf16, #tpu.memory_space<vmem>>, %arg4: memref<2x1x128xf32, #tpu.memory_space<vmem>>, %arg5: memref<32x64xbf16, #tpu.memory_space<vmem>>, %arg6: memref<1x64xf32, #tpu.memory_space<vmem>>, %arg7: memref<64x8xbf16, #tpu.memory_space<vmem>>, %arg8: memref<1x8xf32, #tpu.memory_space<vmem>>, %arg9: memref<2x8xf32, #tpu.memory_space<vmem>>, %arg10: memref<16x128xf32, #tpu.memory_space<vmem>>, %arg11: memref<16x32xf32, #tpu.memory_space<vmem>>) attributes {dimension_semantics = [], scalar_prefetch = 0 : i64, scratch_operands = 2 : i64, tpu.core_type = #tpu.core_type<tc>} {
    %c0 = arith.constant 0 : index
    %c0_0 = arith.constant 0 : index
    %0 = vector.load %arg0[%c0, %c0_0] : memref<16x16xbf16, #tpu.memory_space<vmem>>, vector<16x16xbf16>
    %c0_1 = arith.constant 0 : index
    %c0_2 = arith.constant 0 : index
    %1 = vector.load %arg1[%c0_1, %c0_2] : memref<16x128xbf16, #tpu.memory_space<vmem>>, vector<16x128xbf16>
    %cst = arith.constant dense<0.000000e+00> : vector<16x128xf32>
    %2 = tpu.matmul %0, %1, %cst {dimension_numbers = #tpu.dot_dimension_numbers<[1], [0], [0], [1], [0, 0, 1, 1], [], []>} : vector<16x16xbf16>, vector<16x128xbf16>, vector<16x128xf32> -> vector<16x128xf32>
    %c0_3 = arith.constant 0 : index
    %c0_4 = arith.constant 0 : index
    %c0_5 = arith.constant 0 : index
    %3 = vector.load %arg4[%c0_3, %c0_4, %c0_5] : memref<2x1x128xf32, #tpu.memory_space<vmem>>, vector<1x1x128xf32>
    %4 = vector.shape_cast %3 : vector<1x1x128xf32> to vector<1x128xf32>
    %5 = vector.broadcast %4 : vector<1x128xf32> to vector<16x128xf32>
    %6 = arith.addf %2, %5 : vector<16x128xf32>
    %c0_6 = arith.constant 0 : index
    %c0_7 = arith.constant 0 : index
    %7 = vector.load %arg10[%c0_6, %c0_7] : memref<16x128xf32, #tpu.memory_space<vmem>>, vector<16x128xf32>
    tpu.vector_store %arg10[%c0_6, %c0_7], %6 {strides = array<i32>} : memref<16x128xf32, #tpu.memory_space<vmem>>, vector<16x128xf32>,
    %c0_8 = arith.constant 0 : index
    %c0_9 = arith.constant 0 : index
    %c0_10 = arith.constant 0 : index
    %8 = vector.load %arg3[%c0_8, %c0_9, %c0_10] : memref<2x32x128xbf16, #tpu.memory_space<vmem>>, vector<1x32x128xbf16>
    %9 = vector.shape_cast %8 : vector<1x32x128xbf16> to vector<32x128xbf16>
    %cst_11 = arith.constant 0.000000e+00 : f32
    %10 = vector.broadcast %cst_11 : f32 to vector<2x32xf32>
    %cst_12 = arith.constant 0.000000e+00 : f32
    %11 = vector.broadcast %cst_12 : f32 to vector<2x32xf32>
    %12 = arith.truncf %10 : vector<2x32xf32> to vector<2x32xbf16>
    %cst_13 = arith.constant dense<0.000000e+00> : vector<2x128xf32>
    %13 = tpu.matmul %12, %9, %cst_13 {dimension_numbers = #tpu.dot_dimension_numbers<[1], [0], [0], [1], [0, 0, 1, 1], [], []>} : vector<2x32xbf16>, vector<32x128xbf16>, vector<2x128xf32> -> vector<2x128xf32>
    %c0_14 = arith.constant 0 : index
    %c0_15 = arith.constant 0 : index
    %14 = vector.load %arg10[%c0_14, %c0_15] : memref<16x128xf32, #tpu.memory_space<vmem>>, vector<2x128xf32>
    %15 = arith.addf %13, %14 : vector<2x128xf32>
    %16 = vector.extract_strided_slice %15 {offsets = [0, 0], sizes = [2, 32], strides = [1, 1]} : vector<2x128xf32> to vector<2x32xf32>
    %17 = arith.negf %16 : vector<2x32xf32>
    %18 = math.exp %17 : vector<2x32xf32>
    %cst_16 = arith.constant 1.000000e+00 : f32
    %19 = vector.broadcast %cst_16 : f32 to vector<2x32xf32>
    %20 = arith.addf %19, %18 : vector<2x32xf32>
    %21 = arith.divf %19, %20 : vector<2x32xf32>
    %22 = vector.extract_strided_slice %15 {offsets = [0, 32], sizes = [2, 32], strides = [1, 1]} : vector<2x128xf32> to vector<2x32xf32>
    %23 = arith.negf %22 : vector<2x32xf32>
    %24 = math.exp %23 : vector<2x32xf32>
    %cst_17 = arith.constant 1.000000e+00 : f32
    %25 = vector.broadcast %cst_17 : f32 to vector<2x32xf32>
    %26 = arith.addf %25, %24 : vector<2x32xf32>
    %27 = arith.divf %25, %26 : vector<2x32xf32>
    %28 = vector.extract_strided_slice %15 {offsets = [0, 64], sizes = [2, 32], strides = [1, 1]} : vector<2x128xf32> to vector<2x32xf32>
    %29 = math.tanh %28 : vector<2x32xf32>
    %30 = vector.extract_strided_slice %15 {offsets = [0, 96], sizes = [2, 32], strides = [1, 1]} : vector<2x128xf32> to vector<2x32xf32>
    %31 = arith.negf %30 : vector<2x32xf32>
    %32 = math.exp %31 : vector<2x32xf32>
    %cst_18 = arith.constant 1.000000e+00 : f32
    %33 = vector.broadcast %cst_18 : f32 to vector<2x32xf32>
    %34 = arith.addf %33, %32 : vector<2x32xf32>
    %35 = arith.divf %33, %34 : vector<2x32xf32>
    %36 = arith.mulf %27, %11 : vector<2x32xf32>
    %37 = arith.mulf %21, %29 : vector<2x32xf32>
    %38 = arith.addf %36, %37 : vector<2x32xf32>
    %39 = math.tanh %38 : vector<2x32xf32>
    %40 = arith.mulf %35, %39 : vector<2x32xf32>
    %c0_19 = arith.constant 0 : index
    %c0_20 = arith.constant 0 : index
    %41 = vector.load %arg11[%c0_19, %c0_20] : memref<16x32xf32, #tpu.memory_space<vmem>>, vector<2x32xf32>
    tpu.vector_store %arg11[%c0_19, %c0_20], %40 {strides = array<i32>} : memref<16x32xf32, #tpu.memory_space<vmem>>, vector<2x32xf32>,
    %42 = arith.truncf %40 : vector<2x32xf32> to vector<2x32xbf16>
    %cst_21 = arith.constant dense<0.000000e+00> : vector<2x128xf32>
    %43 = tpu.matmul %42, %9, %cst_21 {dimension_numbers = #tpu.dot_dimension_numbers<[1], [0], [0], [1], [0, 0, 1, 1], [], []>} : vector<2x32xbf16>, vector<32x128xbf16>, vector<2x128xf32> -> vector<2x128xf32>
    %c2 = arith.constant 2 : index
    %c0_22 = arith.constant 0 : index
    %44 = vector.load %arg10[%c2, %c0_22] : memref<16x128xf32, #tpu.memory_space<vmem>>, vector<2x128xf32>
    %45 = arith.addf %43, %44 : vector<2x128xf32>
    %46 = vector.extract_strided_slice %45 {offsets = [0, 0], sizes = [2, 32], strides = [1, 1]} : vector<2x128xf32> to vector<2x32xf32>
    %47 = arith.negf %46 : vector<2x32xf32>
    %48 = math.exp %47 : vector<2x32xf32>
    %cst_23 = arith.constant 1.000000e+00 : f32
    %49 = vector.broadcast %cst_23 : f32 to vector<2x32xf32>
    %50 = arith.addf %49, %48 : vector<2x32xf32>
    %51 = arith.divf %49, %50 : vector<2x32xf32>
    %52 = vector.extract_strided_slice %45 {offsets = [0, 32], sizes = [2, 32], strides = [1, 1]} : vector<2x128xf32> to vector<2x32xf32>
    %53 = arith.negf %52 : vector<2x32xf32>
    %54 = math.exp %53 : vector<2x32xf32>
    %cst_24 = arith.constant 1.000000e+00 : f32
    %55 = vector.broadcast %cst_24 : f32 to vector<2x32xf32>
    %56 = arith.addf %55, %54 : vector<2x32xf32>
    %57 = arith.divf %55, %56 : vector<2x32xf32>
    %58 = vector.extract_strided_slice %45 {offsets = [0, 64], sizes = [2, 32], strides = [1, 1]} : vector<2x128xf32> to vector<2x32xf32>
    %59 = math.tanh %58 : vector<2x32xf32>
    %60 = vector.extract_strided_slice %45 {offsets = [0, 96], sizes = [2, 32], strides = [1, 1]} : vector<2x128xf32> to vector<2x32xf32>
    %61 = arith.negf %60 : vector<2x32xf32>
    %62 = math.exp %61 : vector<2x32xf32>
    %cst_25 = arith.constant 1.000000e+00 : f32
    %63 = vector.broadcast %cst_25 : f32 to vector<2x32xf32>
    %64 = arith.addf %63, %62 : vector<2x32xf32>
    %65 = arith.divf %63, %64 : vector<2x32xf32>
    %66 = arith.mulf %57, %38 : vector<2x32xf32>
    %67 = arith.mulf %51, %59 : vector<2x32xf32>
    %68 = arith.addf %66, %67 : vector<2x32xf32>
    %69 = math.tanh %68 : vector<2x32xf32>
    %70 = arith.mulf %65, %69 : vector<2x32xf32>
    %c2_26 = arith.constant 2 : index
    %c0_27 = arith.constant 0 : index
    %71 = vector.load %arg11[%c2_26, %c0_27] : memref<16x32xf32, #tpu.memory_space<vmem>>, vector<2x32xf32>
    tpu.vector_store %arg11[%c2_26, %c0_27], %70 {strides = array<i32>} : memref<16x32xf32, #tpu.memory_space<vmem>>, vector<2x32xf32>,
    %72 = arith.truncf %70 : vector<2x32xf32> to vector<2x32xbf16>
    %cst_28 = arith.constant dense<0.000000e+00> : vector<2x128xf32>
    %73 = tpu.matmul %72, %9, %cst_28 {dimension_numbers = #tpu.dot_dimension_numbers<[1], [0], [0], [1], [0, 0, 1, 1], [], []>} : vector<2x32xbf16>, vector<32x128xbf16>, vector<2x128xf32> -> vector<2x128xf32>
    %c4 = arith.constant 4 : index
    %c0_29 = arith.constant 0 : index
    %74 = vector.load %arg10[%c4, %c0_29] : memref<16x128xf32, #tpu.memory_space<vmem>>, vector<2x128xf32>
    %75 = arith.addf %73, %74 : vector<2x128xf32>
    %76 = vector.extract_strided_slice %75 {offsets = [0, 0], sizes = [2, 32], strides = [1, 1]} : vector<2x128xf32> to vector<2x32xf32>
    %77 = arith.negf %76 : vector<2x32xf32>
    %78 = math.exp %77 : vector<2x32xf32>
    %cst_30 = arith.constant 1.000000e+00 : f32
    %79 = vector.broadcast %cst_30 : f32 to vector<2x32xf32>
    %80 = arith.addf %79, %78 : vector<2x32xf32>
    %81 = arith.divf %79, %80 : vector<2x32xf32>
    %82 = vector.extract_strided_slice %75 {offsets = [0, 32], sizes = [2, 32], strides = [1, 1]} : vector<2x128xf32> to vector<2x32xf32>
    %83 = arith.negf %82 : vector<2x32xf32>
    %84 = math.exp %83 : vector<2x32xf32>
    %cst_31 = arith.constant 1.000000e+00 : f32
    %85 = vector.broadcast %cst_31 : f32 to vector<2x32xf32>
    %86 = arith.addf %85, %84 : vector<2x32xf32>
    %87 = arith.divf %85, %86 : vector<2x32xf32>
    %88 = vector.extract_strided_slice %75 {offsets = [0, 64], sizes = [2, 32], strides = [1, 1]} : vector<2x128xf32> to vector<2x32xf32>
    %89 = math.tanh %88 : vector<2x32xf32>
    %90 = vector.extract_strided_slice %75 {offsets = [0, 96], sizes = [2, 32], strides = [1, 1]} : vector<2x128xf32> to vector<2x32xf32>
    %91 = arith.negf %90 : vector<2x32xf32>
    %92 = math.exp %91 : vector<2x32xf32>
    %cst_32 = arith.constant 1.000000e+00 : f32
    %93 = vector.broadcast %cst_32 : f32 to vector<2x32xf32>
    %94 = arith.addf %93, %92 : vector<2x32xf32>
    %95 = arith.divf %93, %94 : vector<2x32xf32>
    %96 = arith.mulf %87, %68 : vector<2x32xf32>
    %97 = arith.mulf %81, %89 : vector<2x32xf32>
    %98 = arith.addf %96, %97 : vector<2x32xf32>
    %99 = math.tanh %98 : vector<2x32xf32>
    %100 = arith.mulf %95, %99 : vector<2x32xf32>
    %c4_33 = arith.constant 4 : index
    %c0_34 = arith.constant 0 : index
    %101 = vector.load %arg11[%c4_33, %c0_34] : memref<16x32xf32, #tpu.memory_space<vmem>>, vector<2x32xf32>
    tpu.vector_store %arg11[%c4_33, %c0_34], %100 {strides = array<i32>} : memref<16x32xf32, #tpu.memory_space<vmem>>, vector<2x32xf32>,
    %102 = arith.truncf %100 : vector<2x32xf32> to vector<2x32xbf16>
    %cst_35 = arith.constant dense<0.000000e+00> : vector<2x128xf32>
    %103 = tpu.matmul %102, %9, %cst_35 {dimension_numbers = #tpu.dot_dimension_numbers<[1], [0], [0], [1], [0, 0, 1, 1], [], []>} : vector<2x32xbf16>, vector<32x128xbf16>, vector<2x128xf32> -> vector<2x128xf32>
    %c6 = arith.constant 6 : index
    %c0_36 = arith.constant 0 : index
    %104 = vector.load %arg10[%c6, %c0_36] : memref<16x128xf32, #tpu.memory_space<vmem>>, vector<2x128xf32>
    %105 = arith.addf %103, %104 : vector<2x128xf32>
    %106 = vector.extract_strided_slice %105 {offsets = [0, 0], sizes = [2, 32], strides = [1, 1]} : vector<2x128xf32> to vector<2x32xf32>
    %107 = arith.negf %106 : vector<2x32xf32>
    %108 = math.exp %107 : vector<2x32xf32>
    %cst_37 = arith.constant 1.000000e+00 : f32
    %109 = vector.broadcast %cst_37 : f32 to vector<2x32xf32>
    %110 = arith.addf %109, %108 : vector<2x32xf32>
    %111 = arith.divf %109, %110 : vector<2x32xf32>
    %112 = vector.extract_strided_slice %105 {offsets = [0, 32], sizes = [2, 32], strides = [1, 1]} : vector<2x128xf32> to vector<2x32xf32>
    %113 = arith.negf %112 : vector<2x32xf32>
    %114 = math.exp %113 : vector<2x32xf32>
    %cst_38 = arith.constant 1.000000e+00 : f32
    %115 = vector.broadcast %cst_38 : f32 to vector<2x32xf32>
    %116 = arith.addf %115, %114 : vector<2x32xf32>
    %117 = arith.divf %115, %116 : vector<2x32xf32>
    %118 = vector.extract_strided_slice %105 {offsets = [0, 64], sizes = [2, 32], strides = [1, 1]} : vector<2x128xf32> to vector<2x32xf32>
    %119 = math.tanh %118 : vector<2x32xf32>
    %120 = vector.extract_strided_slice %105 {offsets = [0, 96], sizes = [2, 32], strides = [1, 1]} : vector<2x128xf32> to vector<2x32xf32>
    %121 = arith.negf %120 : vector<2x32xf32>
    %122 = math.exp %121 : vector<2x32xf32>
    %cst_39 = arith.constant 1.000000e+00 : f32
    %123 = vector.broadcast %cst_39 : f32 to vector<2x32xf32>
    %124 = arith.addf %123, %122 : vector<2x32xf32>
    %125 = arith.divf %123, %124 : vector<2x32xf32>
    %126 = arith.mulf %117, %98 : vector<2x32xf32>
    %127 = arith.mulf %111, %119 : vector<2x32xf32>
    %128 = arith.addf %126, %127 : vector<2x32xf32>
    %129 = math.tanh %128 : vector<2x32xf32>
    %130 = arith.mulf %125, %129 : vector<2x32xf32>
    %c6_40 = arith.constant 6 : index
    %c0_41 = arith.constant 0 : index
    %131 = vector.load %arg11[%c6_40, %c0_41] : memref<16x32xf32, #tpu.memory_space<vmem>>, vector<2x32xf32>
    tpu.vector_store %arg11[%c6_40, %c0_41], %130 {strides = array<i32>} : memref<16x32xf32, #tpu.memory_space<vmem>>, vector<2x32xf32>,
    %132 = arith.truncf %130 : vector<2x32xf32> to vector<2x32xbf16>
    %cst_42 = arith.constant dense<0.000000e+00> : vector<2x128xf32>
    %133 = tpu.matmul %132, %9, %cst_42 {dimension_numbers = #tpu.dot_dimension_numbers<[1], [0], [0], [1], [0, 0, 1, 1], [], []>} : vector<2x32xbf16>, vector<32x128xbf16>, vector<2x128xf32> -> vector<2x128xf32>
    %c8 = arith.constant 8 : index
    %c0_43 = arith.constant 0 : index
    %134 = vector.load %arg10[%c8, %c0_43] : memref<16x128xf32, #tpu.memory_space<vmem>>, vector<2x128xf32>
    %135 = arith.addf %133, %134 : vector<2x128xf32>
    %136 = vector.extract_strided_slice %135 {offsets = [0, 0], sizes = [2, 32], strides = [1, 1]} : vector<2x128xf32> to vector<2x32xf32>
    %137 = arith.negf %136 : vector<2x32xf32>
    %138 = math.exp %137 : vector<2x32xf32>
    %cst_44 = arith.constant 1.000000e+00 : f32
    %139 = vector.broadcast %cst_44 : f32 to vector<2x32xf32>
    %140 = arith.addf %139, %138 : vector<2x32xf32>
    %141 = arith.divf %139, %140 : vector<2x32xf32>
    %142 = vector.extract_strided_slice %135 {offsets = [0, 32], sizes = [2, 32], strides = [1, 1]} : vector<2x128xf32> to vector<2x32xf32>
    %143 = arith.negf %142 : vector<2x32xf32>
    %144 = math.exp %143 : vector<2x32xf32>
    %cst_45 = arith.constant 1.000000e+00 : f32
    %145 = vector.broadcast %cst_45 : f32 to vector<2x32xf32>
    %146 = arith.addf %145, %144 : vector<2x32xf32>
    %147 = arith.divf %145, %146 : vector<2x32xf32>
    %148 = vector.extract_strided_slice %135 {offsets = [0, 64], sizes = [2, 32], strides = [1, 1]} : vector<2x128xf32> to vector<2x32xf32>
    %149 = math.tanh %148 : vector<2x32xf32>
    %150 = vector.extract_strided_slice %135 {offsets = [0, 96], sizes = [2, 32], strides = [1, 1]} : vector<2x128xf32> to vector<2x32xf32>
    %151 = arith.negf %150 : vector<2x32xf32>
    %152 = math.exp %151 : vector<2x32xf32>
    %cst_46 = arith.constant 1.000000e+00 : f32
    %153 = vector.broadcast %cst_46 : f32 to vector<2x32xf32>
    %154 = arith.addf %153, %152 : vector<2x32xf32>
    %155 = arith.divf %153, %154 : vector<2x32xf32>
    %156 = arith.mulf %147, %128 : vector<2x32xf32>
    %157 = arith.mulf %141, %149 : vector<2x32xf32>
    %158 = arith.addf %156, %157 : vector<2x32xf32>
    %159 = math.tanh %158 : vector<2x32xf32>
    %160 = arith.mulf %155, %159 : vector<2x32xf32>
    %c8_47 = arith.constant 8 : index
    %c0_48 = arith.constant 0 : index
    %161 = vector.load %arg11[%c8_47, %c0_48] : memref<16x32xf32, #tpu.memory_space<vmem>>, vector<2x32xf32>
    tpu.vector_store %arg11[%c8_47, %c0_48], %160 {strides = array<i32>} : memref<16x32xf32, #tpu.memory_space<vmem>>, vector<2x32xf32>,
    %162 = arith.truncf %160 : vector<2x32xf32> to vector<2x32xbf16>
    %cst_49 = arith.constant dense<0.000000e+00> : vector<2x128xf32>
    %163 = tpu.matmul %162, %9, %cst_49 {dimension_numbers = #tpu.dot_dimension_numbers<[1], [0], [0], [1], [0, 0, 1, 1], [], []>} : vector<2x32xbf16>, vector<32x128xbf16>, vector<2x128xf32> -> vector<2x128xf32>
    %c10 = arith.constant 10 : index
    %c0_50 = arith.constant 0 : index
    %164 = vector.load %arg10[%c10, %c0_50] : memref<16x128xf32, #tpu.memory_space<vmem>>, vector<2x128xf32>
    %165 = arith.addf %163, %164 : vector<2x128xf32>
    %166 = vector.extract_strided_slice %165 {offsets = [0, 0], sizes = [2, 32], strides = [1, 1]} : vector<2x128xf32> to vector<2x32xf32>
    %167 = arith.negf %166 : vector<2x32xf32>
    %168 = math.exp %167 : vector<2x32xf32>
    %cst_51 = arith.constant 1.000000e+00 : f32
    %169 = vector.broadcast %cst_51 : f32 to vector<2x32xf32>
    %170 = arith.addf %169, %168 : vector<2x32xf32>
    %171 = arith.divf %169, %170 : vector<2x32xf32>
    %172 = vector.extract_strided_slice %165 {offsets = [0, 32], sizes = [2, 32], strides = [1, 1]} : vector<2x128xf32> to vector<2x32xf32>
    %173 = arith.negf %172 : vector<2x32xf32>
    %174 = math.exp %173 : vector<2x32xf32>
    %cst_52 = arith.constant 1.000000e+00 : f32
    %175 = vector.broadcast %cst_52 : f32 to vector<2x32xf32>
    %176 = arith.addf %175, %174 : vector<2x32xf32>
    %177 = arith.divf %175, %176 : vector<2x32xf32>
    %178 = vector.extract_strided_slice %165 {offsets = [0, 64], sizes = [2, 32], strides = [1, 1]} : vector<2x128xf32> to vector<2x32xf32>
    %179 = math.tanh %178 : vector<2x32xf32>
    %180 = vector.extract_strided_slice %165 {offsets = [0, 96], sizes = [2, 32], strides = [1, 1]} : vector<2x128xf32> to vector<2x32xf32>
    %181 = arith.negf %180 : vector<2x32xf32>
    %182 = math.exp %181 : vector<2x32xf32>
    %cst_53 = arith.constant 1.000000e+00 : f32
    %183 = vector.broadcast %cst_53 : f32 to vector<2x32xf32>
    %184 = arith.addf %183, %182 : vector<2x32xf32>
    %185 = arith.divf %183, %184 : vector<2x32xf32>
    %186 = arith.mulf %177, %158 : vector<2x32xf32>
    %187 = arith.mulf %171, %179 : vector<2x32xf32>
    %188 = arith.addf %186, %187 : vector<2x32xf32>
    %189 = math.tanh %188 : vector<2x32xf32>
    %190 = arith.mulf %185, %189 : vector<2x32xf32>
    %c10_54 = arith.constant 10 : index
    %c0_55 = arith.constant 0 : index
    %191 = vector.load %arg11[%c10_54, %c0_55] : memref<16x32xf32, #tpu.memory_space<vmem>>, vector<2x32xf32>
    tpu.vector_store %arg11[%c10_54, %c0_55], %190 {strides = array<i32>} : memref<16x32xf32, #tpu.memory_space<vmem>>, vector<2x32xf32>,
    %192 = arith.truncf %190 : vector<2x32xf32> to vector<2x32xbf16>
    %cst_56 = arith.constant dense<0.000000e+00> : vector<2x128xf32>
    %193 = tpu.matmul %192, %9, %cst_56 {dimension_numbers = #tpu.dot_dimension_numbers<[1], [0], [0], [1], [0, 0, 1, 1], [], []>} : vector<2x32xbf16>, vector<32x128xbf16>, vector<2x128xf32> -> vector<2x128xf32>
    %c12 = arith.constant 12 : index
    %c0_57 = arith.constant 0 : index
    %194 = vector.load %arg10[%c12, %c0_57] : memref<16x128xf32, #tpu.memory_space<vmem>>, vector<2x128xf32>
    %195 = arith.addf %193, %194 : vector<2x128xf32>
    %196 = vector.extract_strided_slice %195 {offsets = [0, 0], sizes = [2, 32], strides = [1, 1]} : vector<2x128xf32> to vector<2x32xf32>
    %197 = arith.negf %196 : vector<2x32xf32>
    %198 = math.exp %197 : vector<2x32xf32>
    %cst_58 = arith.constant 1.000000e+00 : f32
    %199 = vector.broadcast %cst_58 : f32 to vector<2x32xf32>
    %200 = arith.addf %199, %198 : vector<2x32xf32>
    %201 = arith.divf %199, %200 : vector<2x32xf32>
    %202 = vector.extract_strided_slice %195 {offsets = [0, 32], sizes = [2, 32], strides = [1, 1]} : vector<2x128xf32> to vector<2x32xf32>
    %203 = arith.negf %202 : vector<2x32xf32>
    %204 = math.exp %203 : vector<2x32xf32>
    %cst_59 = arith.constant 1.000000e+00 : f32
    %205 = vector.broadcast %cst_59 : f32 to vector<2x32xf32>
    %206 = arith.addf %205, %204 : vector<2x32xf32>
    %207 = arith.divf %205, %206 : vector<2x32xf32>
    %208 = vector.extract_strided_slice %195 {offsets = [0, 64], sizes = [2, 32], strides = [1, 1]} : vector<2x128xf32> to vector<2x32xf32>
    %209 = math.tanh %208 : vector<2x32xf32>
    %210 = vector.extract_strided_slice %195 {offsets = [0, 96], sizes = [2, 32], strides = [1, 1]} : vector<2x128xf32> to vector<2x32xf32>
    %211 = arith.negf %210 : vector<2x32xf32>
    %212 = math.exp %211 : vector<2x32xf32>
    %cst_60 = arith.constant 1.000000e+00 : f32
    %213 = vector.broadcast %cst_60 : f32 to vector<2x32xf32>
    %214 = arith.addf %213, %212 : vector<2x32xf32>
    %215 = arith.divf %213, %214 : vector<2x32xf32>
    %216 = arith.mulf %207, %188 : vector<2x32xf32>
    %217 = arith.mulf %201, %209 : vector<2x32xf32>
    %218 = arith.addf %216, %217 : vector<2x32xf32>
    %219 = math.tanh %218 : vector<2x32xf32>
    %220 = arith.mulf %215, %219 : vector<2x32xf32>
    %c12_61 = arith.constant 12 : index
    %c0_62 = arith.constant 0 : index
    %221 = vector.load %arg11[%c12_61, %c0_62] : memref<16x32xf32, #tpu.memory_space<vmem>>, vector<2x32xf32>
    tpu.vector_store %arg11[%c12_61, %c0_62], %220 {strides = array<i32>} : memref<16x32xf32, #tpu.memory_space<vmem>>, vector<2x32xf32>,
    %222 = arith.truncf %220 : vector<2x32xf32> to vector<2x32xbf16>
    %cst_63 = arith.constant dense<0.000000e+00> : vector<2x128xf32>
    %223 = tpu.matmul %222, %9, %cst_63 {dimension_numbers = #tpu.dot_dimension_numbers<[1], [0], [0], [1], [0, 0, 1, 1], [], []>} : vector<2x32xbf16>, vector<32x128xbf16>, vector<2x128xf32> -> vector<2x128xf32>
    %c14 = arith.constant 14 : index
    %c0_64 = arith.constant 0 : index
    %224 = vector.load %arg10[%c14, %c0_64] : memref<16x128xf32, #tpu.memory_space<vmem>>, vector<2x128xf32>
    %225 = arith.addf %223, %224 : vector<2x128xf32>
    %226 = vector.extract_strided_slice %225 {offsets = [0, 0], sizes = [2, 32], strides = [1, 1]} : vector<2x128xf32> to vector<2x32xf32>
    %227 = arith.negf %226 : vector<2x32xf32>
    %228 = math.exp %227 : vector<2x32xf32>
    %cst_65 = arith.constant 1.000000e+00 : f32
    %229 = vector.broadcast %cst_65 : f32 to vector<2x32xf32>
    %230 = arith.addf %229, %228 : vector<2x32xf32>
    %231 = arith.divf %229, %230 : vector<2x32xf32>
    %232 = vector.extract_strided_slice %225 {offsets = [0, 32], sizes = [2, 32], strides = [1, 1]} : vector<2x128xf32> to vector<2x32xf32>
    %233 = arith.negf %232 : vector<2x32xf32>
    %234 = math.exp %233 : vector<2x32xf32>
    %cst_66 = arith.constant 1.000000e+00 : f32
    %235 = vector.broadcast %cst_66 : f32 to vector<2x32xf32>
    %236 = arith.addf %235, %234 : vector<2x32xf32>
    %237 = arith.divf %235, %236 : vector<2x32xf32>
    %238 = vector.extract_strided_slice %225 {offsets = [0, 64], sizes = [2, 32], strides = [1, 1]} : vector<2x128xf32> to vector<2x32xf32>
    %239 = math.tanh %238 : vector<2x32xf32>
    %240 = vector.extract_strided_slice %225 {offsets = [0, 96], sizes = [2, 32], strides = [1, 1]} : vector<2x128xf32> to vector<2x32xf32>
    %241 = arith.negf %240 : vector<2x32xf32>
    %242 = math.exp %241 : vector<2x32xf32>
    %cst_67 = arith.constant 1.000000e+00 : f32
    %243 = vector.broadcast %cst_67 : f32 to vector<2x32xf32>
    %244 = arith.addf %243, %242 : vector<2x32xf32>
    %245 = arith.divf %243, %244 : vector<2x32xf32>
    %246 = arith.mulf %237, %218 : vector<2x32xf32>
    %247 = arith.mulf %231, %239 : vector<2x32xf32>
    %248 = arith.addf %246, %247 : vector<2x32xf32>
    %249 = math.tanh %248 : vector<2x32xf32>
    %250 = arith.mulf %245, %249 : vector<2x32xf32>
    %c14_68 = arith.constant 14 : index
    %c0_69 = arith.constant 0 : index
    %251 = vector.load %arg11[%c14_68, %c0_69] : memref<16x32xf32, #tpu.memory_space<vmem>>, vector<2x32xf32>
    tpu.vector_store %arg11[%c14_68, %c0_69], %250 {strides = array<i32>} : memref<16x32xf32, #tpu.memory_space<vmem>>, vector<2x32xf32>,
    %c0_70 = arith.constant 0 : index
    %c0_71 = arith.constant 0 : index
    %252 = vector.load %arg11[%c0_70, %c0_71] : memref<16x32xf32, #tpu.memory_space<vmem>>, vector<16x32xf32>
    %253 = arith.truncf %252 : vector<16x32xf32> to vector<16x32xbf16>
    %c0_72 = arith.constant 0 : index
    %c0_73 = arith.constant 0 : index
    %c0_74 = arith.constant 0 : index
    %254 = vector.load %arg2[%c0_72, %c0_73, %c0_74] : memref<1x32x128xbf16, #tpu.memory_space<vmem>>, vector<1x32x128xbf16>
    %255 = vector.shape_cast %254 : vector<1x32x128xbf16> to vector<32x128xbf16>
    %cst_75 = arith.constant dense<0.000000e+00> : vector<16x128xf32>
    %256 = tpu.matmul %253, %255, %cst_75 {dimension_numbers = #tpu.dot_dimension_numbers<[1], [0], [0], [1], [0, 0, 1, 1], [], []>} : vector<16x32xbf16>, vector<32x128xbf16>, vector<16x128xf32> -> vector<16x128xf32>
    %c1 = arith.constant 1 : index
    %c0_76 = arith.constant 0 : index
    %c0_77 = arith.constant 0 : index
    %257 = vector.load %arg4[%c1, %c0_76, %c0_77] : memref<2x1x128xf32, #tpu.memory_space<vmem>>, vector<1x1x128xf32>
    %258 = vector.shape_cast %257 : vector<1x1x128xf32> to vector<1x128xf32>
    %259 = vector.broadcast %258 : vector<1x128xf32> to vector<16x128xf32>
    %260 = arith.addf %256, %259 : vector<16x128xf32>
    %c0_78 = arith.constant 0 : index
    %c0_79 = arith.constant 0 : index
    %261 = vector.load %arg10[%c0_78, %c0_79] : memref<16x128xf32, #tpu.memory_space<vmem>>, vector<16x128xf32>
    tpu.vector_store %arg10[%c0_78, %c0_79], %260 {strides = array<i32>} : memref<16x128xf32, #tpu.memory_space<vmem>>, vector<16x128xf32>,
    %c1_80 = arith.constant 1 : index
    %c0_81 = arith.constant 0 : index
    %c0_82 = arith.constant 0 : index
    %262 = vector.load %arg3[%c1_80, %c0_81, %c0_82] : memref<2x32x128xbf16, #tpu.memory_space<vmem>>, vector<1x32x128xbf16>
    %263 = vector.shape_cast %262 : vector<1x32x128xbf16> to vector<32x128xbf16>
    %cst_83 = arith.constant 0.000000e+00 : f32
    %264 = vector.broadcast %cst_83 : f32 to vector<2x32xf32>
    %cst_84 = arith.constant 0.000000e+00 : f32
    %265 = vector.broadcast %cst_84 : f32 to vector<2x32xf32>
    %266 = arith.truncf %264 : vector<2x32xf32> to vector<2x32xbf16>
    %cst_85 = arith.constant dense<0.000000e+00> : vector<2x128xf32>
    %267 = tpu.matmul %266, %263, %cst_85 {dimension_numbers = #tpu.dot_dimension_numbers<[1], [0], [0], [1], [0, 0, 1, 1], [], []>} : vector<2x32xbf16>, vector<32x128xbf16>, vector<2x128xf32> -> vector<2x128xf32>
    %c0_86 = arith.constant 0 : index
    %c0_87 = arith.constant 0 : index
    %268 = vector.load %arg10[%c0_86, %c0_87] : memref<16x128xf32, #tpu.memory_space<vmem>>, vector<2x128xf32>
    %269 = arith.addf %267, %268 : vector<2x128xf32>
    %270 = vector.extract_strided_slice %269 {offsets = [0, 0], sizes = [2, 32], strides = [1, 1]} : vector<2x128xf32> to vector<2x32xf32>
    %271 = arith.negf %270 : vector<2x32xf32>
    %272 = math.exp %271 : vector<2x32xf32>
    %cst_88 = arith.constant 1.000000e+00 : f32
    %273 = vector.broadcast %cst_88 : f32 to vector<2x32xf32>
    %274 = arith.addf %273, %272 : vector<2x32xf32>
    %275 = arith.divf %273, %274 : vector<2x32xf32>
    %276 = vector.extract_strided_slice %269 {offsets = [0, 32], sizes = [2, 32], strides = [1, 1]} : vector<2x128xf32> to vector<2x32xf32>
    %277 = arith.negf %276 : vector<2x32xf32>
    %278 = math.exp %277 : vector<2x32xf32>
    %cst_89 = arith.constant 1.000000e+00 : f32
    %279 = vector.broadcast %cst_89 : f32 to vector<2x32xf32>
    %280 = arith.addf %279, %278 : vector<2x32xf32>
    %281 = arith.divf %279, %280 : vector<2x32xf32>
    %282 = vector.extract_strided_slice %269 {offsets = [0, 64], sizes = [2, 32], strides = [1, 1]} : vector<2x128xf32> to vector<2x32xf32>
    %283 = math.tanh %282 : vector<2x32xf32>
    %284 = vector.extract_strided_slice %269 {offsets = [0, 96], sizes = [2, 32], strides = [1, 1]} : vector<2x128xf32> to vector<2x32xf32>
    %285 = arith.negf %284 : vector<2x32xf32>
    %286 = math.exp %285 : vector<2x32xf32>
    %cst_90 = arith.constant 1.000000e+00 : f32
    %287 = vector.broadcast %cst_90 : f32 to vector<2x32xf32>
    %288 = arith.addf %287, %286 : vector<2x32xf32>
    %289 = arith.divf %287, %288 : vector<2x32xf32>
    %290 = arith.mulf %281, %265 : vector<2x32xf32>
    %291 = arith.mulf %275, %283 : vector<2x32xf32>
    %292 = arith.addf %290, %291 : vector<2x32xf32>
    %293 = math.tanh %292 : vector<2x32xf32>
    %294 = arith.mulf %289, %293 : vector<2x32xf32>
    %295 = arith.truncf %294 : vector<2x32xf32> to vector<2x32xbf16>
    %cst_91 = arith.constant dense<0.000000e+00> : vector<2x128xf32>
    %296 = tpu.matmul %295, %263, %cst_91 {dimension_numbers = #tpu.dot_dimension_numbers<[1], [0], [0], [1], [0, 0, 1, 1], [], []>} : vector<2x32xbf16>, vector<32x128xbf16>, vector<2x128xf32> -> vector<2x128xf32>
    %c2_92 = arith.constant 2 : index
    %c0_93 = arith.constant 0 : index
    %297 = vector.load %arg10[%c2_92, %c0_93] : memref<16x128xf32, #tpu.memory_space<vmem>>, vector<2x128xf32>
    %298 = arith.addf %296, %297 : vector<2x128xf32>
    %299 = vector.extract_strided_slice %298 {offsets = [0, 0], sizes = [2, 32], strides = [1, 1]} : vector<2x128xf32> to vector<2x32xf32>
    %300 = arith.negf %299 : vector<2x32xf32>
    %301 = math.exp %300 : vector<2x32xf32>
    %cst_94 = arith.constant 1.000000e+00 : f32
    %302 = vector.broadcast %cst_94 : f32 to vector<2x32xf32>
    %303 = arith.addf %302, %301 : vector<2x32xf32>
    %304 = arith.divf %302, %303 : vector<2x32xf32>
    %305 = vector.extract_strided_slice %298 {offsets = [0, 32], sizes = [2, 32], strides = [1, 1]} : vector<2x128xf32> to vector<2x32xf32>
    %306 = arith.negf %305 : vector<2x32xf32>
    %307 = math.exp %306 : vector<2x32xf32>
    %cst_95 = arith.constant 1.000000e+00 : f32
    %308 = vector.broadcast %cst_95 : f32 to vector<2x32xf32>
    %309 = arith.addf %308, %307 : vector<2x32xf32>
    %310 = arith.divf %308, %309 : vector<2x32xf32>
    %311 = vector.extract_strided_slice %298 {offsets = [0, 64], sizes = [2, 32], strides = [1, 1]} : vector<2x128xf32> to vector<2x32xf32>
    %312 = math.tanh %311 : vector<2x32xf32>
    %313 = vector.extract_strided_slice %298 {offsets = [0, 96], sizes = [2, 32], strides = [1, 1]} : vector<2x128xf32> to vector<2x32xf32>
    %314 = arith.negf %313 : vector<2x32xf32>
    %315 = math.exp %314 : vector<2x32xf32>
    %cst_96 = arith.constant 1.000000e+00 : f32
    %316 = vector.broadcast %cst_96 : f32 to vector<2x32xf32>
    %317 = arith.addf %316, %315 : vector<2x32xf32>
    %318 = arith.divf %316, %317 : vector<2x32xf32>
    %319 = arith.mulf %310, %292 : vector<2x32xf32>
    %320 = arith.mulf %304, %312 : vector<2x32xf32>
    %321 = arith.addf %319, %320 : vector<2x32xf32>
    %322 = math.tanh %321 : vector<2x32xf32>
    %323 = arith.mulf %318, %322 : vector<2x32xf32>
    %324 = arith.truncf %323 : vector<2x32xf32> to vector<2x32xbf16>
    %cst_97 = arith.constant dense<0.000000e+00> : vector<2x128xf32>
    %325 = tpu.matmul %324, %263, %cst_97 {dimension_numbers = #tpu.dot_dimension_numbers<[1], [0], [0], [1], [0, 0, 1, 1], [], []>} : vector<2x32xbf16>, vector<32x128xbf16>, vector<2x128xf32> -> vector<2x128xf32>
    %c4_98 = arith.constant 4 : index
    %c0_99 = arith.constant 0 : index
    %326 = vector.load %arg10[%c4_98, %c0_99] : memref<16x128xf32, #tpu.memory_space<vmem>>, vector<2x128xf32>
    %327 = arith.addf %325, %326 : vector<2x128xf32>
    %328 = vector.extract_strided_slice %327 {offsets = [0, 0], sizes = [2, 32], strides = [1, 1]} : vector<2x128xf32> to vector<2x32xf32>
    %329 = arith.negf %328 : vector<2x32xf32>
    %330 = math.exp %329 : vector<2x32xf32>
    %cst_100 = arith.constant 1.000000e+00 : f32
    %331 = vector.broadcast %cst_100 : f32 to vector<2x32xf32>
    %332 = arith.addf %331, %330 : vector<2x32xf32>
    %333 = arith.divf %331, %332 : vector<2x32xf32>
    %334 = vector.extract_strided_slice %327 {offsets = [0, 32], sizes = [2, 32], strides = [1, 1]} : vector<2x128xf32> to vector<2x32xf32>
    %335 = arith.negf %334 : vector<2x32xf32>
    %336 = math.exp %335 : vector<2x32xf32>
    %cst_101 = arith.constant 1.000000e+00 : f32
    %337 = vector.broadcast %cst_101 : f32 to vector<2x32xf32>
    %338 = arith.addf %337, %336 : vector<2x32xf32>
    %339 = arith.divf %337, %338 : vector<2x32xf32>
    %340 = vector.extract_strided_slice %327 {offsets = [0, 64], sizes = [2, 32], strides = [1, 1]} : vector<2x128xf32> to vector<2x32xf32>
    %341 = math.tanh %340 : vector<2x32xf32>
    %342 = vector.extract_strided_slice %327 {offsets = [0, 96], sizes = [2, 32], strides = [1, 1]} : vector<2x128xf32> to vector<2x32xf32>
    %343 = arith.negf %342 : vector<2x32xf32>
    %344 = math.exp %343 : vector<2x32xf32>
    %cst_102 = arith.constant 1.000000e+00 : f32
    %345 = vector.broadcast %cst_102 : f32 to vector<2x32xf32>
    %346 = arith.addf %345, %344 : vector<2x32xf32>
    %347 = arith.divf %345, %346 : vector<2x32xf32>
    %348 = arith.mulf %339, %321 : vector<2x32xf32>
    %349 = arith.mulf %333, %341 : vector<2x32xf32>
    %350 = arith.addf %348, %349 : vector<2x32xf32>
    %351 = math.tanh %350 : vector<2x32xf32>
    %352 = arith.mulf %347, %351 : vector<2x32xf32>
    %353 = arith.truncf %352 : vector<2x32xf32> to vector<2x32xbf16>
    %cst_103 = arith.constant dense<0.000000e+00> : vector<2x128xf32>
    %354 = tpu.matmul %353, %263, %cst_103 {dimension_numbers = #tpu.dot_dimension_numbers<[1], [0], [0], [1], [0, 0, 1, 1], [], []>} : vector<2x32xbf16>, vector<32x128xbf16>, vector<2x128xf32> -> vector<2x128xf32>
    %c6_104 = arith.constant 6 : index
    %c0_105 = arith.constant 0 : index
    %355 = vector.load %arg10[%c6_104, %c0_105] : memref<16x128xf32, #tpu.memory_space<vmem>>, vector<2x128xf32>
    %356 = arith.addf %354, %355 : vector<2x128xf32>
    %357 = vector.extract_strided_slice %356 {offsets = [0, 0], sizes = [2, 32], strides = [1, 1]} : vector<2x128xf32> to vector<2x32xf32>
    %358 = arith.negf %357 : vector<2x32xf32>
    %359 = math.exp %358 : vector<2x32xf32>
    %cst_106 = arith.constant 1.000000e+00 : f32
    %360 = vector.broadcast %cst_106 : f32 to vector<2x32xf32>
    %361 = arith.addf %360, %359 : vector<2x32xf32>
    %362 = arith.divf %360, %361 : vector<2x32xf32>
    %363 = vector.extract_strided_slice %356 {offsets = [0, 32], sizes = [2, 32], strides = [1, 1]} : vector<2x128xf32> to vector<2x32xf32>
    %364 = arith.negf %363 : vector<2x32xf32>
    %365 = math.exp %364 : vector<2x32xf32>
    %cst_107 = arith.constant 1.000000e+00 : f32
    %366 = vector.broadcast %cst_107 : f32 to vector<2x32xf32>
    %367 = arith.addf %366, %365 : vector<2x32xf32>
    %368 = arith.divf %366, %367 : vector<2x32xf32>
    %369 = vector.extract_strided_slice %356 {offsets = [0, 64], sizes = [2, 32], strides = [1, 1]} : vector<2x128xf32> to vector<2x32xf32>
    %370 = math.tanh %369 : vector<2x32xf32>
    %371 = vector.extract_strided_slice %356 {offsets = [0, 96], sizes = [2, 32], strides = [1, 1]} : vector<2x128xf32> to vector<2x32xf32>
    %372 = arith.negf %371 : vector<2x32xf32>
    %373 = math.exp %372 : vector<2x32xf32>
    %cst_108 = arith.constant 1.000000e+00 : f32
    %374 = vector.broadcast %cst_108 : f32 to vector<2x32xf32>
    %375 = arith.addf %374, %373 : vector<2x32xf32>
    %376 = arith.divf %374, %375 : vector<2x32xf32>
    %377 = arith.mulf %368, %350 : vector<2x32xf32>
    %378 = arith.mulf %362, %370 : vector<2x32xf32>
    %379 = arith.addf %377, %378 : vector<2x32xf32>
    %380 = math.tanh %379 : vector<2x32xf32>
    %381 = arith.mulf %376, %380 : vector<2x32xf32>
    %382 = arith.truncf %381 : vector<2x32xf32> to vector<2x32xbf16>
    %cst_109 = arith.constant dense<0.000000e+00> : vector<2x128xf32>
    %383 = tpu.matmul %382, %263, %cst_109 {dimension_numbers = #tpu.dot_dimension_numbers<[1], [0], [0], [1], [0, 0, 1, 1], [], []>} : vector<2x32xbf16>, vector<32x128xbf16>, vector<2x128xf32> -> vector<2x128xf32>
    %c8_110 = arith.constant 8 : index
    %c0_111 = arith.constant 0 : index
    %384 = vector.load %arg10[%c8_110, %c0_111] : memref<16x128xf32, #tpu.memory_space<vmem>>, vector<2x128xf32>
    %385 = arith.addf %383, %384 : vector<2x128xf32>
    %386 = vector.extract_strided_slice %385 {offsets = [0, 0], sizes = [2, 32], strides = [1, 1]} : vector<2x128xf32> to vector<2x32xf32>
    %387 = arith.negf %386 : vector<2x32xf32>
    %388 = math.exp %387 : vector<2x32xf32>
    %cst_112 = arith.constant 1.000000e+00 : f32
    %389 = vector.broadcast %cst_112 : f32 to vector<2x32xf32>
    %390 = arith.addf %389, %388 : vector<2x32xf32>
    %391 = arith.divf %389, %390 : vector<2x32xf32>
    %392 = vector.extract_strided_slice %385 {offsets = [0, 32], sizes = [2, 32], strides = [1, 1]} : vector<2x128xf32> to vector<2x32xf32>
    %393 = arith.negf %392 : vector<2x32xf32>
    %394 = math.exp %393 : vector<2x32xf32>
    %cst_113 = arith.constant 1.000000e+00 : f32
    %395 = vector.broadcast %cst_113 : f32 to vector<2x32xf32>
    %396 = arith.addf %395, %394 : vector<2x32xf32>
    %397 = arith.divf %395, %396 : vector<2x32xf32>
    %398 = vector.extract_strided_slice %385 {offsets = [0, 64], sizes = [2, 32], strides = [1, 1]} : vector<2x128xf32> to vector<2x32xf32>
    %399 = math.tanh %398 : vector<2x32xf32>
    %400 = vector.extract_strided_slice %385 {offsets = [0, 96], sizes = [2, 32], strides = [1, 1]} : vector<2x128xf32> to vector<2x32xf32>
    %401 = arith.negf %400 : vector<2x32xf32>
    %402 = math.exp %401 : vector<2x32xf32>
    %cst_114 = arith.constant 1.000000e+00 : f32
    %403 = vector.broadcast %cst_114 : f32 to vector<2x32xf32>
    %404 = arith.addf %403, %402 : vector<2x32xf32>
    %405 = arith.divf %403, %404 : vector<2x32xf32>
    %406 = arith.mulf %397, %379 : vector<2x32xf32>
    %407 = arith.mulf %391, %399 : vector<2x32xf32>
    %408 = arith.addf %406, %407 : vector<2x32xf32>
    %409 = math.tanh %408 : vector<2x32xf32>
    %410 = arith.mulf %405, %409 : vector<2x32xf32>
    %411 = arith.truncf %410 : vector<2x32xf32> to vector<2x32xbf16>
    %cst_115 = arith.constant dense<0.000000e+00> : vector<2x128xf32>
    %412 = tpu.matmul %411, %263, %cst_115 {dimension_numbers = #tpu.dot_dimension_numbers<[1], [0], [0], [1], [0, 0, 1, 1], [], []>} : vector<2x32xbf16>, vector<32x128xbf16>, vector<2x128xf32> -> vector<2x128xf32>
    %c10_116 = arith.constant 10 : index
    %c0_117 = arith.constant 0 : index
    %413 = vector.load %arg10[%c10_116, %c0_117] : memref<16x128xf32, #tpu.memory_space<vmem>>, vector<2x128xf32>
    %414 = arith.addf %412, %413 : vector<2x128xf32>
    %415 = vector.extract_strided_slice %414 {offsets = [0, 0], sizes = [2, 32], strides = [1, 1]} : vector<2x128xf32> to vector<2x32xf32>
    %416 = arith.negf %415 : vector<2x32xf32>
    %417 = math.exp %416 : vector<2x32xf32>
    %cst_118 = arith.constant 1.000000e+00 : f32
    %418 = vector.broadcast %cst_118 : f32 to vector<2x32xf32>
    %419 = arith.addf %418, %417 : vector<2x32xf32>
    %420 = arith.divf %418, %419 : vector<2x32xf32>
    %421 = vector.extract_strided_slice %414 {offsets = [0, 32], sizes = [2, 32], strides = [1, 1]} : vector<2x128xf32> to vector<2x32xf32>
    %422 = arith.negf %421 : vector<2x32xf32>
    %423 = math.exp %422 : vector<2x32xf32>
    %cst_119 = arith.constant 1.000000e+00 : f32
    %424 = vector.broadcast %cst_119 : f32 to vector<2x32xf32>
    %425 = arith.addf %424, %423 : vector<2x32xf32>
    %426 = arith.divf %424, %425 : vector<2x32xf32>
    %427 = vector.extract_strided_slice %414 {offsets = [0, 64], sizes = [2, 32], strides = [1, 1]} : vector<2x128xf32> to vector<2x32xf32>
    %428 = math.tanh %427 : vector<2x32xf32>
    %429 = vector.extract_strided_slice %414 {offsets = [0, 96], sizes = [2, 32], strides = [1, 1]} : vector<2x128xf32> to vector<2x32xf32>
    %430 = arith.negf %429 : vector<2x32xf32>
    %431 = math.exp %430 : vector<2x32xf32>
    %cst_120 = arith.constant 1.000000e+00 : f32
    %432 = vector.broadcast %cst_120 : f32 to vector<2x32xf32>
    %433 = arith.addf %432, %431 : vector<2x32xf32>
    %434 = arith.divf %432, %433 : vector<2x32xf32>
    %435 = arith.mulf %426, %408 : vector<2x32xf32>
    %436 = arith.mulf %420, %428 : vector<2x32xf32>
    %437 = arith.addf %435, %436 : vector<2x32xf32>
    %438 = math.tanh %437 : vector<2x32xf32>
    %439 = arith.mulf %434, %438 : vector<2x32xf32>
    %440 = arith.truncf %439 : vector<2x32xf32> to vector<2x32xbf16>
    %cst_121 = arith.constant dense<0.000000e+00> : vector<2x128xf32>
    %441 = tpu.matmul %440, %263, %cst_121 {dimension_numbers = #tpu.dot_dimension_numbers<[1], [0], [0], [1], [0, 0, 1, 1], [], []>} : vector<2x32xbf16>, vector<32x128xbf16>, vector<2x128xf32> -> vector<2x128xf32>
    %c12_122 = arith.constant 12 : index
    %c0_123 = arith.constant 0 : index
    %442 = vector.load %arg10[%c12_122, %c0_123] : memref<16x128xf32, #tpu.memory_space<vmem>>, vector<2x128xf32>
    %443 = arith.addf %441, %442 : vector<2x128xf32>
    %444 = vector.extract_strided_slice %443 {offsets = [0, 0], sizes = [2, 32], strides = [1, 1]} : vector<2x128xf32> to vector<2x32xf32>
    %445 = arith.negf %444 : vector<2x32xf32>
    %446 = math.exp %445 : vector<2x32xf32>
    %cst_124 = arith.constant 1.000000e+00 : f32
    %447 = vector.broadcast %cst_124 : f32 to vector<2x32xf32>
    %448 = arith.addf %447, %446 : vector<2x32xf32>
    %449 = arith.divf %447, %448 : vector<2x32xf32>
    %450 = vector.extract_strided_slice %443 {offsets = [0, 32], sizes = [2, 32], strides = [1, 1]} : vector<2x128xf32> to vector<2x32xf32>
    %451 = arith.negf %450 : vector<2x32xf32>
    %452 = math.exp %451 : vector<2x32xf32>
    %cst_125 = arith.constant 1.000000e+00 : f32
    %453 = vector.broadcast %cst_125 : f32 to vector<2x32xf32>
    %454 = arith.addf %453, %452 : vector<2x32xf32>
    %455 = arith.divf %453, %454 : vector<2x32xf32>
    %456 = vector.extract_strided_slice %443 {offsets = [0, 64], sizes = [2, 32], strides = [1, 1]} : vector<2x128xf32> to vector<2x32xf32>
    %457 = math.tanh %456 : vector<2x32xf32>
    %458 = vector.extract_strided_slice %443 {offsets = [0, 96], sizes = [2, 32], strides = [1, 1]} : vector<2x128xf32> to vector<2x32xf32>
    %459 = arith.negf %458 : vector<2x32xf32>
    %460 = math.exp %459 : vector<2x32xf32>
    %cst_126 = arith.constant 1.000000e+00 : f32
    %461 = vector.broadcast %cst_126 : f32 to vector<2x32xf32>
    %462 = arith.addf %461, %460 : vector<2x32xf32>
    %463 = arith.divf %461, %462 : vector<2x32xf32>
    %464 = arith.mulf %455, %437 : vector<2x32xf32>
    %465 = arith.mulf %449, %457 : vector<2x32xf32>
    %466 = arith.addf %464, %465 : vector<2x32xf32>
    %467 = math.tanh %466 : vector<2x32xf32>
    %468 = arith.mulf %463, %467 : vector<2x32xf32>
    %469 = arith.truncf %468 : vector<2x32xf32> to vector<2x32xbf16>
    %cst_127 = arith.constant dense<0.000000e+00> : vector<2x128xf32>
    %470 = tpu.matmul %469, %263, %cst_127 {dimension_numbers = #tpu.dot_dimension_numbers<[1], [0], [0], [1], [0, 0, 1, 1], [], []>} : vector<2x32xbf16>, vector<32x128xbf16>, vector<2x128xf32> -> vector<2x128xf32>
    %c14_128 = arith.constant 14 : index
    %c0_129 = arith.constant 0 : index
    %471 = vector.load %arg10[%c14_128, %c0_129] : memref<16x128xf32, #tpu.memory_space<vmem>>, vector<2x128xf32>
    %472 = arith.addf %470, %471 : vector<2x128xf32>
    %473 = vector.extract_strided_slice %472 {offsets = [0, 0], sizes = [2, 32], strides = [1, 1]} : vector<2x128xf32> to vector<2x32xf32>
    %474 = arith.negf %473 : vector<2x32xf32>
    %475 = math.exp %474 : vector<2x32xf32>
    %cst_130 = arith.constant 1.000000e+00 : f32
    %476 = vector.broadcast %cst_130 : f32 to vector<2x32xf32>
    %477 = arith.addf %476, %475 : vector<2x32xf32>
    %478 = arith.divf %476, %477 : vector<2x32xf32>
    %479 = vector.extract_strided_slice %472 {offsets = [0, 32], sizes = [2, 32], strides = [1, 1]} : vector<2x128xf32> to vector<2x32xf32>
    %480 = arith.negf %479 : vector<2x32xf32>
    %481 = math.exp %480 : vector<2x32xf32>
    %cst_131 = arith.constant 1.000000e+00 : f32
    %482 = vector.broadcast %cst_131 : f32 to vector<2x32xf32>
    %483 = arith.addf %482, %481 : vector<2x32xf32>
    %484 = arith.divf %482, %483 : vector<2x32xf32>
    %485 = vector.extract_strided_slice %472 {offsets = [0, 64], sizes = [2, 32], strides = [1, 1]} : vector<2x128xf32> to vector<2x32xf32>
    %486 = math.tanh %485 : vector<2x32xf32>
    %487 = vector.extract_strided_slice %472 {offsets = [0, 96], sizes = [2, 32], strides = [1, 1]} : vector<2x128xf32> to vector<2x32xf32>
    %488 = arith.negf %487 : vector<2x32xf32>
    %489 = math.exp %488 : vector<2x32xf32>
    %cst_132 = arith.constant 1.000000e+00 : f32
    %490 = vector.broadcast %cst_132 : f32 to vector<2x32xf32>
    %491 = arith.addf %490, %489 : vector<2x32xf32>
    %492 = arith.divf %490, %491 : vector<2x32xf32>
    %493 = arith.mulf %484, %466 : vector<2x32xf32>
    %494 = arith.mulf %478, %486 : vector<2x32xf32>
    %495 = arith.addf %493, %494 : vector<2x32xf32>
    %496 = math.tanh %495 : vector<2x32xf32>
    %497 = arith.mulf %492, %496 : vector<2x32xf32>
    %cst_133 = arith.constant 0.000000e+00 : f32
    %498 = vector.broadcast %cst_133 : f32 to vector<2x32xf32>
    %499 = arith.maximumf %497, %498 : vector<2x32xf32>
    %500 = arith.truncf %499 : vector<2x32xf32> to vector<2x32xbf16>
    %c0_134 = arith.constant 0 : index
    %c0_135 = arith.constant 0 : index
    %501 = vector.load %arg5[%c0_134, %c0_135] : memref<32x64xbf16, #tpu.memory_space<vmem>>, vector<32x64xbf16>
    %cst_136 = arith.constant dense<0.000000e+00> : vector<2x64xf32>
    %502 = tpu.matmul %500, %501, %cst_136 {dimension_numbers = #tpu.dot_dimension_numbers<[1], [0], [0], [1], [0, 0, 1, 1], [], []>} : vector<2x32xbf16>, vector<32x64xbf16>, vector<2x64xf32> -> vector<2x64xf32>
    %c0_137 = arith.constant 0 : index
    %c0_138 = arith.constant 0 : index
    %503 = vector.load %arg6[%c0_137, %c0_138] : memref<1x64xf32, #tpu.memory_space<vmem>>, vector<1x64xf32>
    %504 = vector.broadcast %503 : vector<1x64xf32> to vector<2x64xf32>
    %505 = arith.addf %502, %504 : vector<2x64xf32>
    %cst_139 = arith.constant 0.000000e+00 : f32
    %506 = vector.broadcast %cst_139 : f32 to vector<2x64xf32>
    %507 = arith.maximumf %505, %506 : vector<2x64xf32>
    %508 = arith.truncf %507 : vector<2x64xf32> to vector<2x64xbf16>
    %c0_140 = arith.constant 0 : index
    %c0_141 = arith.constant 0 : index
    %509 = vector.load %arg7[%c0_140, %c0_141] : memref<64x8xbf16, #tpu.memory_space<vmem>>, vector<64x8xbf16>
    %cst_142 = arith.constant dense<0.000000e+00> : vector<2x8xf32>
    %510 = tpu.matmul %508, %509, %cst_142 {dimension_numbers = #tpu.dot_dimension_numbers<[1], [0], [0], [1], [0, 0, 1, 1], [], []>} : vector<2x64xbf16>, vector<64x8xbf16>, vector<2x8xf32> -> vector<2x8xf32>
    %c0_143 = arith.constant 0 : index
    %c0_144 = arith.constant 0 : index
    %511 = vector.load %arg8[%c0_143, %c0_144] : memref<1x8xf32, #tpu.memory_space<vmem>>, vector<1x8xf32>
    %512 = vector.broadcast %511 : vector<1x8xf32> to vector<2x8xf32>
    %513 = arith.addf %510, %512 : vector<2x8xf32>
    %c0_145 = arith.constant 0 : index
    %c0_146 = arith.constant 0 : index
    %514 = vector.load %arg9[%c0_145, %c0_146] : memref<2x8xf32, #tpu.memory_space<vmem>>, vector<2x8xf32>
    tpu.vector_store %arg9[%c0_145, %c0_146], %513 {strides = array<i32>} : memref<2x8xf32, #tpu.memory_space<vmem>>, vector<2x8xf32>,
    return
  }
}

</mosaic_0001>

<llo_original>
// kernel: lstm_forward.1
$region0: #{lstm_forward.1}
  #allocation0 [shape = 'u32[]', space=smem, size = 0x4, offset = 0x4, fixed_abs, tag = 'smem constant byte address 0x4 - core index']
  #allocation1 [shape = 'u32[144,128]{1,0:T(1,128)}', space=vmem, size = 0x12000, scoped, tag = 'internal scratch']
  #allocation2 [shape = 'f32[16,128]{1,0:T(8,128)}', space=vmem, size = 0x2000, scoped, tag = 'scratch operand']
  #allocation3 [shape = 'f32[16,32]{1,0:T(8,128)}', space=vmem, size = 0x2000, scoped, tag = 'scratch operand']
  %s0 = inlined_call_operand.vmem [shape: bf16[16,16], index: 0, kind: input, shape index: {}]
  %s1 = inlined_call_operand.vmem [shape: bf16[16,128], index: 1, kind: input, shape index: {}]
  %s2 = inlined_call_operand.vmem [shape: bf16[1,32,128], index: 2, kind: input, shape index: {}]
  %s3 = inlined_call_operand.vmem [shape: bf16[2,32,128], index: 3, kind: input, shape index: {}]
  %s4 = inlined_call_operand.vmem [shape: f32[2,1,128], index: 4, kind: input, shape index: {}]
  %s5 = inlined_call_operand.vmem [shape: bf16[32,64], index: 5, kind: input, shape index: {}]
  %s6 = inlined_call_operand.vmem [shape: f32[1,64], index: 6, kind: input, shape index: {}]
  %s7 = inlined_call_operand.vmem [shape: bf16[64,8], index: 7, kind: input, shape index: {}]
  %s8 = inlined_call_operand.vmem [shape: f32[1,8], index: 8, kind: input, shape index: {}]
  %s9 = inlined_call_operand.hbm [shape: f32[2,8], index: 9, kind: output, shape index: {}]
  %s10 = sld [smem:[#allocation0]]
  $region46: #{lstm_forward.1} parent=0
    _
  %s12 = ssub.s32 1, %s10
  %s13 = scalar_select 0, %s12, %s10
  $region1: #{lstm_forward.1} parent=0
    #allocation4 [shape = 'u8[1024]{0}', space=vmem, size = 0x400, scoped, tag = 'output window, operand 0, single buffered']
    #allocation5 [shape = 's32[1]{0}', space=sflag, size = 0x4, scoped, tag = 'scoped memory for lstm_forward.1']
    %14 = vsyncpa [#allocation5], 0
    // Predicated region
    $region2: #{lstm_forward.1} parent=1 // pred_check
      _
    $region3: #{lstm_forward.1} parent=1 // pred_check_branch
      %16 = sbr.rel (0) target = $region5
    $region4: #{lstm_forward.1} parent=1 // pred_region
      _
    $region5: #{lstm_forward.1} parent=1 // pred_fallthru
      _
    // Predicated region
    $region6: #{lstm_forward.1} parent=1 // pred_check
      _
    $region7: #{lstm_forward.1} parent=1 // pred_check_branch
      %18 = sbr.rel (0) target = $region9
    $region8: #{lstm_forward.1} parent=1 // pred_region
      _
    $region9: #{lstm_forward.1} parent=1 // pred_fallthru
      _
    // Predicated region
    $region10: #{lstm_forward.1} parent=1 // pred_check
      _
    $region11: #{lstm_forward.1} parent=1 // pred_check_branch
      %20 = sbr.rel (0) target = $region13
    $region12: #{lstm_forward.1} parent=1 // pred_region
      _
    $region13: #{lstm_forward.1} parent=1 // pred_fallthru
      _
    // Predicated region
    $region14: #{lstm_forward.1} parent=1 // pred_check
      _
    $region15: #{lstm_forward.1} parent=1 // pred_check_branch
      %22 = sbr.rel (0) target = $region17
    $region16: #{lstm_forward.1} parent=1 // pred_region
      _
    $region17: #{lstm_forward.1} parent=1 // pred_fallthru
      _
    // Predicated region
    $region18: #{lstm_forward.1} parent=1 // pred_check
      _
    $region19: #{lstm_forward.1} parent=1 // pred_check_branch
      %24 = sbr.rel (0) target = $region21
    $region20: #{lstm_forward.1} parent=1 // pred_region
      _
    $region21: #{lstm_forward.1} parent=1 // pred_fallthru
      _
    // Predicated region
    $region22: #{lstm_forward.1} parent=1 // pred_check
      _
    $region23: #{lstm_forward.1} parent=1 // pred_check_branch
      %26 = sbr.rel (0) target = $region25
    $region24: #{lstm_forward.1} parent=1 // pred_region
      _
    $region25: #{lstm_forward.1} parent=1 // pred_fallthru
      _
    // Predicated region
    $region26: #{lstm_forward.1} parent=1 // pred_check
      _
    $region27: #{lstm_forward.1} parent=1 // pred_check_branch
      %28 = sbr.rel (0) target = $region29
    $region28: #{lstm_forward.1} parent=1 // pred_region
      _
    $region29: #{lstm_forward.1} parent=1 // pred_fallthru
      _
    // Predicated region
    $region30: #{lstm_forward.1} parent=1 // pred_check
      _
    $region31: #{lstm_forward.1} parent=1 // pred_check_branch
      %30 = sbr.rel (0) target = $region33
    $region32: #{lstm_forward.1} parent=1 // pred_region
      _
    $region33: #{lstm_forward.1} parent=1 // pred_fallthru
      _
    // Predicated region
    $region34: #{lstm_forward.1} parent=1 // pred_check
      _
    $region35: #{lstm_forward.1} parent=1 // pred_check_branch
      %32 = sbr.rel (0) target = $region37
    $region36: #{lstm_forward.1} parent=1 // pred_region
      _
    $region37: #{lstm_forward.1} parent=1 // pred_fallthru
      _
    %v34 = vld [vmem:[%s0] sm:$0xf]
    %v35 = vld [vmem:[%s0 + $0x4] sm:$0xf]
    %v36 = vld [vmem:[%s1] sm:$0xf]
    %v37 = vld [vmem:[%s1 + $0x4] sm:$0xf]
    %v38 = vld [vmem:[%s4] sm:$0x1]
    %v40 = vlaneseq
    %v41 = vshrl.u32 %v40, 7
    %v42 = vsub.s32 0, %v41
    %v43 = vrot.slane %v38, %v42
    %v47 = vunpack.c.l.b16 %v34
    %v48 = vunpack.c.l.b16 %v35
    %v49 = vpack.c.b16 %v48, %v47
    %v52 = vunpack.c.l.b16 %v36
    %v53 = vunpack.c.l.b16 %v37
    %v54 = vpack.c.b16 %v53, %v52
    %vm56 = vcmask 130048
    %v58 = vsel %vm56, %v49, 0
    %60 = vmatprep.subr.bf16.mxu0 0
    %61 = vmatpush1.bf16.msra.mxu0 %v54
    %62 = vmatprep.subr.bf16.mxu0 0
    %63 = vmatpush1.bf16.msra.mxu0 0
    %64 = vmatprep.subr.bf16.mxu0 0
    %65 = vmatpush1.bf16.msra.mxu0 0
    %66 = vmatprep.subr.bf16.mxu0 0
    %67 = vmatpush1.bf16.msra.mxu0 0
    %68 = vmatprep.subr.bf16.mxu0 0
    %69 = vmatpush1.bf16.msra.mxu0 0
    %70 = vmatprep.subr.bf16.mxu0 0
    %71 = vmatpush1.bf16.msra.mxu0 0
    %72 = vmatprep.subr.bf16.mxu0 0
    %73 = vmatpush1.bf16.msra.mxu0 0
    %74 = vmatprep.subr.bf16.mxu0 0
    %75 = vmatpush1.bf16.msra.mxu0 0
    %76 = vmatprep.subr.bf16.mxu0 0
    %77 = vmatpush1.bf16.msra.mxu0 0
    %78 = vmatprep.subr.bf16.mxu0 0
    %79 = vmatpush1.bf16.msra.mxu0 0
    %80 = vmatprep.subr.bf16.mxu0 0
    %81 = vmatpush1.bf16.msra.mxu0 0
    %82 = vmatprep.subr.bf16.mxu0 0
    %83 = vmatpush1.bf16.msra.mxu0 0
    %84 = vmatprep.subr.bf16.mxu0 0
    %85 = vmatpush1.bf16.msra.mxu0 0
    %86 = vmatprep.subr.bf16.mxu0 0
    %87 = vmatpush1.bf16.msra.mxu0 0
    %88 = vmatprep.subr.bf16.mxu0 0
    %89 = vmatpush1.bf16.msra.mxu0 0
    %90 = vmatprep.subr.bf16.mxu0 0
    %91 = vmatpush1.bf16.msra.mxu0 0
    %92 = vmatprep.mubr.bf16.mxu0 0
    %93 = vmatmul.mubr.bf16.gmra.mrb[0].mxu0 %v58
    %v94 = vpop.f32.mrb[0].mxu0
    %v95 = vadd.f32 %v43, %v94
    %v96 = vpop.f32.mrb[0].mxu0
    %v97 = vpop.f32.mrb[0].mxu0
    %v98 = vadd.f32 %v43, %v97
    %v99 = vpop.f32.mrb[0].mxu0
    %100 = vdwg.mxu0
    %101 = vst [vmem:[#allocation2] sm:$0xff] %v95
    %102 = vst [vmem:[#allocation2 + $0x8] sm:$0xff] %v98
    %v103 = vld [vmem:[%s3] sm:$0xf]
    %v104 = vld [vmem:[%s3 + $0x4] sm:$0xf]
    %v105 = vld [vmem:[%s3 + $0x8] sm:$0xf]
    %v106 = vld [vmem:[%s3 + $0xc] sm:$0xf]
    %v107 = vld [vmem:[#allocation2] sm:$0x3]
    %v112 = vunpack.c.l.b16 %v103
    %v113 = vunpack.c.l.b16 %v104
    %v114 = vunpack.c.l.b16 %v105
    %v115 = vunpack.c.l.b16 %v106
    %v116 = vpack.c.b16 %v113, %v112
    %v117 = vpack.c.b16 %v115, %v114
    %vm120 = vcmask 261120
    %v122 = vsel %vm120, 0, 0
    %124 = vmatprep.subr.bf16.mxu0 0
    %125 = vmatpush1.bf16.msra.mxu0 %v116
    %126 = vmatprep.subr.bf16.mxu0 0
    %127 = vmatpush1.bf16.msra.mxu0 %v117
    %128 = vmatprep.subr.bf16.mxu0 0
    %129 = vmatpush1.bf16.msra.mxu0 0
    %130 = vmatprep.subr.bf16.mxu0 0
    %131 = vmatpush1.bf16.msra.mxu0 0
    %132 = vmatprep.subr.bf16.mxu0 0
    %133 = vmatpush1.bf16.msra.mxu0 0
    %134 = vmatprep.subr.bf16.mxu0 0
    %135 = vmatpush1.bf16.msra.mxu0 0
    %136 = vmatprep.subr.bf16.mxu0 0
    %137 = vmatpush1.bf16.msra.mxu0 0
    %138 = vmatprep.subr.bf16.mxu0 0
    %139 = vmatpush1.bf16.msra.mxu0 0
    %140 = vmatprep.subr.bf16.mxu0 0
    %141 = vmatpush1.bf16.msra.mxu0 0
    %142 = vmatprep.subr.bf16.mxu0 0
    %143 = vmatpush1.bf16.msra.mxu0 0
    %144 = vmatprep.subr.bf16.mxu0 0
    %145 = vmatpush1.bf16.msra.mxu0 0
    %146 = vmatprep.subr.bf16.mxu0 0
    %147 = vmatpush1.bf16.msra.mxu0 0
    %148 = vmatprep.subr.bf16.mxu0 0
    %149 = vmatpush1.bf16.msra.mxu0 0
    %150 = vmatprep.subr.bf16.mxu0 0
    %151 = vmatpush1.bf16.msra.mxu0 0
    %152 = vmatprep.subr.bf16.mxu0 0
    %153 = vmatpush1.bf16.msra.mxu0 0
    %154 = vmatprep.subr.bf16.mxu0 0
    %155 = vmatpush1.bf16.msra.mxu0 0
    %156 = vmatprep.mubr.bf16.mxu0 0
    %157 = vmatmul.mubr.bf16.gmra.mrb[0].mxu0 %v122
    %v158 = vpop.f32.mrb[0].mxu0
    %v159 = vadd.f32 %v107, %v158
    %v160 = vpop.f32.mrb[0].mxu0
    %v161 = vpop.f32.mrb[0].mxu0
    %v162 = vpop.f32.mrb[0].mxu0
    %163 = vdwg.mxu0
    %v164 = vxor.u32 %v159, 2147483648
    %v165 = vmul.f32 %v164, 1.442695
    %v166 = vpow.pop %v165
    %v167 = vadd.f32 %v166, 1.0
    %v168 = vrcp.pop %v167
    %v169 = vmul.f32 1.0, %v168
    %v170 = vtanh.pop %v159
    %v171 = vmul.f32 %v169, 0.0
    %173 = vrot.lane.b32.xlu0 %v170, 64
    %v174 = vpop.permute.xlu0 %173
    %v176 = vmul.f32 %v169, %v174
    %178 = vrot.lane.b32.xlu0 %v176, 32
    %v179 = vpop.permute.xlu0 %178
    %v181 = vadd.f32 %v171, %v179
    %v182 = vtanh.pop %v181
    %184 = vrot.lane.b32.xlu0 %v182, 64
    %v185 = vpop.permute.xlu0 %184
    %v187 = vmul.f32 %v169, %v185
    %189 = vrot.lane.b32.xlu0 %v187, 32
    %v190 = vpop.permute.xlu0 %189
    %vm192 = vcmask 254976
    %193 = vst.msk [vmem:[#allocation3] sm:$0x3] %vm192, %v190
    %v194 = vpack.c.bf16 %v187, %v187
    %v195 = vld [vmem:[#allocation2 + $0x2] sm:$0x3]
    %197 = vrot.lane.b32.xlu0 %v194, 32
    %v198 = vpop.permute.xlu0 %197
    %v200 = vsel %vm120, %v198, 0
    %202 = vmatprep.subr.bf16.mxu0 0
    %203 = vmatpush1.bf16.msra.mxu0 %v116
    %204 = vmatprep.subr.bf16.mxu0 0
    %205 = vmatpush1.bf16.msra.mxu0 %v117
    %206 = vmatprep.subr.bf16.mxu0 0
    %207 = vmatpush1.bf16.msra.mxu0 0
    %208 = vmatprep.subr.bf16.mxu0 0
    %209 = vmatpush1.bf16.msra.mxu0 0
    %210 = vmatprep.subr.bf16.mxu0 0
    %211 = vmatpush1.bf16.msra.mxu0 0
    %212 = vmatprep.subr.bf16.mxu0 0
    %213 = vmatpush1.bf16.msra.mxu0 0
    %214 = vmatprep.subr.bf16.mxu0 0
    %215 = vmatpush1.bf16.msra.mxu0 0
    %216 = vmatprep.subr.bf16.mxu0 0
    %217 = vmatpush1.bf16.msra.mxu0 0
    %218 = vmatprep.subr.bf16.mxu0 0
    %219 = vmatpush1.bf16.msra.mxu0 0
    %220 = vmatprep.subr.bf16.mxu0 0
    %221 = vmatpush1.bf16.msra.mxu0 0
    %222 = vmatprep.subr.bf16.mxu0 0
    %223 = vmatpush1.bf16.msra.mxu0 0
    %224 = vmatprep.subr.bf16.mxu0 0
    %225 = vmatpush1.bf16.msra.mxu0 0
    %226 = vmatprep.subr.bf16.mxu0 0
    %227 = vmatpush1.bf16.msra.mxu0 0
    %228 = vmatprep.subr.bf16.mxu0 0
    %229 = vmatpush1.bf16.msra.mxu0 0
    %230 = vmatprep.subr.bf16.mxu0 0
    %231 = vmatpush1.bf16.msra.mxu0 0
    %232 = vmatprep.subr.bf16.mxu0 0
    %233 = vmatpush1.bf16.msra.mxu0 0
    %234 = vmatprep.mubr.bf16.mxu0 0
    %235 = vmatmul.mubr.bf16.gmra.mrb[0].mxu0 %v200
    %v236 = vpop.f32.mrb[0].mxu0
    %v237 = vadd.f32 %v195, %v236
    %v238 = vpop.f32.mrb[0].mxu0
    %v239 = vpop.f32.mrb[0].mxu0
    %v240 = vpop.f32.mrb[0].mxu0
    %241 = vdwg.mxu0
    %v242 = vxor.u32 %v237, 2147483648
    %v243 = vmul.f32 %v242, 1.442695
    %v244 = vpow.pop %v243
    %v245 = vadd.f32 %v244, 1.0
    %v246 = vrcp.pop %v245
    %v247 = vmul.f32 1.0, %v246
    %v248 = vtanh.pop %v237
    %v249 = vmul.f32 %v247, %v181
    %251 = vrot.lane.b32.xlu0 %v248, 64
    %v252 = vpop.permute.xlu0 %251
    %v254 = vmul.f32 %v247, %v252
    %256 = vrot.lane.b32.xlu0 %v254, 32
    %v257 = vpop.permute.xlu0 %256
    %v259 = vadd.f32 %v249, %v257
    %v260 = vtanh.pop %v259
    %262 = vrot.lane.b32.xlu0 %v260, 64
    %v263 = vpop.permute.xlu0 %262
    %v265 = vmul.f32 %v247, %v263
    %267 = vrot.lane.b32.xlu0 %v265, 32
    %v268 = vpop.permute.xlu0 %267
    %270 = vst.msk [vmem:[#allocation3 + $0x2] sm:$0x3] %vm192, %v268
    %v271 = vpack.c.bf16 %v265, %v265
    %v272 = vld [vmem:[#allocation2 + $0x4] sm:$0x3]
    %274 = vrot.lane.b32.xlu0 %v271, 32
    %v275 = vpop.permute.xlu0 %274
    %v277 = vsel %vm120, %v275, 0
    %279 = vmatprep.subr.bf16.mxu0 0
    %280 = vmatpush1.bf16.msra.mxu0 %v116
    %281 = vmatprep.subr.bf16.mxu0 0
    %282 = vmatpush1.bf16.msra.mxu0 %v117
    %283 = vmatprep.subr.bf16.mxu0 0
    %284 = vmatpush1.bf16.msra.mxu0 0
    %285 = vmatprep.subr.bf16.mxu0 0
    %286 = vmatpush1.bf16.msra.mxu0 0
    %287 = vmatprep.subr.bf16.mxu0 0
    %288 = vmatpush1.bf16.msra.mxu0 0
    %289 = vmatprep.subr.bf16.mxu0 0
    %290 = vmatpush1.bf16.msra.mxu0 0
    %291 = vmatprep.subr.bf16.mxu0 0
    %292 = vmatpush1.bf16.msra.mxu0 0
    %293 = vmatprep.subr.bf16.mxu0 0
    %294 = vmatpush1.bf16.msra.mxu0 0
    %295 = vmatprep.subr.bf16.mxu0 0
    %296 = vmatpush1.bf16.msra.mxu0 0
    %297 = vmatprep.subr.bf16.mxu0 0
    %298 = vmatpush1.bf16.msra.mxu0 0
    %299 = vmatprep.subr.bf16.mxu0 0
    %300 = vmatpush1.bf16.msra.mxu0 0
    %301 = vmatprep.subr.bf16.mxu0 0
    %302 = vmatpush1.bf16.msra.mxu0 0
    %303 = vmatprep.subr.bf16.mxu0 0
    %304 = vmatpush1.bf16.msra.mxu0 0
    %305 = vmatprep.subr.bf16.mxu0 0
    %306 = vmatpush1.bf16.msra.mxu0 0
    %307 = vmatprep.subr.bf16.mxu0 0
    %308 = vmatpush1.bf16.msra.mxu0 0
    %309 = vmatprep.subr.bf16.mxu0 0
    %310 = vmatpush1.bf16.msra.mxu0 0
    %311 = vmatprep.mubr.bf16.mxu0 0
    %312 = vmatmul.mubr.bf16.gmra.mrb[0].mxu0 %v277
    %v313 = vpop.f32.mrb[0].mxu0
    %v314 = vadd.f32 %v272, %v313
    %v315 = vpop.f32.mrb[0].mxu0
    %v316 = vpop.f32.mrb[0].mxu0
    %v317 = vpop.f32.mrb[0].mxu0
    %318 = vdwg.mxu0
    %v319 = vxor.u32 %v314, 2147483648
    %v320 = vmul.f32 %v319, 1.442695
    %v321 = vpow.pop %v320
    %v322 = vadd.f32 %v321, 1.0
    %v323 = vrcp.pop %v322
    %v324 = vmul.f32 1.0, %v323
    %v325 = vtanh.pop %v314
    %v326 = vmul.f32 %v324, %v259
    %328 = vrot.lane.b32.xlu0 %v325, 64
    %v329 = vpop.permute.xlu0 %328
    %v331 = vmul.f32 %v324, %v329
    %333 = vrot.lane.b32.xlu0 %v331, 32
    %v334 = vpop.permute.xlu0 %333
    %v336 = vadd.f32 %v326, %v334
    %v337 = vtanh.pop %v336
    %339 = vrot.lane.b32.xlu0 %v337, 64
    %v340 = vpop.permute.xlu0 %339
    %v342 = vmul.f32 %v324, %v340
    %344 = vrot.lane.b32.xlu0 %v342, 32
    %v345 = vpop.permute.xlu0 %344
    %347 = vst.msk [vmem:[#allocation3 + $0x4] sm:$0x3] %vm192, %v345
    %v348 = vpack.c.bf16 %v342, %v342
    %v349 = vld [vmem:[#allocation2 + $0x6] sm:$0x3]
    %351 = vrot.lane.b32.xlu0 %v348, 32
    %v352 = vpop.permute.xlu0 %351
    %v354 = vsel %vm120, %v352, 0
    %356 = vmatprep.subr.bf16.mxu0 0
    %357 = vmatpush1.bf16.msra.mxu0 %v116
    %358 = vmatprep.subr.bf16.mxu0 0
    %359 = vmatpush1.bf16.msra.mxu0 %v117
    %360 = vmatprep.subr.bf16.mxu0 0
    %361 = vmatpush1.bf16.msra.mxu0 0
    %362 = vmatprep.subr.bf16.mxu0 0
    %363 = vmatpush1.bf16.msra.mxu0 0
    %364 = vmatprep.subr.bf16.mxu0 0
    %365 = vmatpush1.bf16.msra.mxu0 0
    %366 = vmatprep.subr.bf16.mxu0 0
    %367 = vmatpush1.bf16.msra.mxu0 0
    %368 = vmatprep.subr.bf16.mxu0 0
    %369 = vmatpush1.bf16.msra.mxu0 0
    %370 = vmatprep.subr.bf16.mxu0 0
    %371 = vmatpush1.bf16.msra.mxu0 0
    %372 = vmatprep.subr.bf16.mxu0 0
    %373 = vmatpush1.bf16.msra.mxu0 0
    %374 = vmatprep.subr.bf16.mxu0 0
    %375 = vmatpush1.bf16.msra.mxu0 0
    %376 = vmatprep.subr.bf16.mxu0 0
    %377 = vmatpush1.bf16.msra.mxu0 0
    %378 = vmatprep.subr.bf16.mxu0 0
    %379 = vmatpush1.bf16.msra.mxu0 0
    %380 = vmatprep.subr.bf16.mxu0 0
    %381 = vmatpush1.bf16.msra.mxu0 0
    %382 = vmatprep.subr.bf16.mxu0 0
    %383 = vmatpush1.bf16.msra.mxu0 0
    %384 = vmatprep.subr.bf16.mxu0 0
    %385 = vmatpush1.bf16.msra.mxu0 0
    %386 = vmatprep.subr.bf16.mxu0 0
    %387 = vmatpush1.bf16.msra.mxu0 0
    %388 = vmatprep.mubr.bf16.mxu0 0
    %389 = vmatmul.mubr.bf16.gmra.mrb[0].mxu0 %v354
    %v390 = vpop.f32.mrb[0].mxu0
    %v391 = vadd.f32 %v349, %v390
    %v392 = vpop.f32.mrb[0].mxu0
    %v393 = vpop.f32.mrb[0].mxu0
    %v394 = vpop.f32.mrb[0].mxu0
    %395 = vdwg.mxu0
    %v396 = vxor.u32 %v391, 2147483648
    %v397 = vmul.f32 %v396, 1.442695
    %v398 = vpow.pop %v397
    %v399 = vadd.f32 %v398, 1.0
    %v400 = vrcp.pop %v399
    %v401 = vmul.f32 1.0, %v400
    %v402 = vtanh.pop %v391
    %v403 = vmul.f32 %v401, %v336
    %405 = vrot.lane.b32.xlu0 %v402, 64
    %v406 = vpop.permute.xlu0 %405
    %v408 = vmul.f32 %v401, %v406
    %410 = vrot.lane.b32.xlu0 %v408, 32
    %v411 = vpop.permute.xlu0 %410
    %v413 = vadd.f32 %v403, %v411
    %v414 = vtanh.pop %v413
    %416 = vrot.lane.b32.xlu0 %v414, 64
    %v417 = vpop.permute.xlu0 %416
    %v419 = vmul.f32 %v401, %v417
    %421 = vrot.lane.b32.xlu0 %v419, 32
    %v422 = vpop.permute.xlu0 %421
    %424 = vst.msk [vmem:[#allocation3 + $0x6] sm:$0x3] %vm192, %v422
    %v425 = vpack.c.bf16 %v419, %v419
    %v426 = vld [vmem:[#allocation2 + $0x8] sm:$0x3]
    %428 = vrot.lane.b32.xlu0 %v425, 32
    %v429 = vpop.permute.xlu0 %428
    %v431 = vsel %vm120, %v429, 0
    %433 = vmatprep.subr.bf16.mxu0 0
    %434 = vmatpush1.bf16.msra.mxu0 %v116
    %435 = vmatprep.subr.bf16.mxu0 0
    %436 = vmatpush1.bf16.msra.mxu0 %v117
    %437 = vmatprep.subr.bf16.mxu0 0
    %438 = vmatpush1.bf16.msra.mxu0 0
    %439 = vmatprep.subr.bf16.mxu0 0
    %440 = vmatpush1.bf16.msra.mxu0 0
    %441 = vmatprep.subr.bf16.mxu0 0
    %442 = vmatpush1.bf16.msra.mxu0 0
    %443 = vmatprep.subr.bf16.mxu0 0
    %444 = vmatpush1.bf16.msra.mxu0 0
    %445 = vmatprep.subr.bf16.mxu0 0
    %446 = vmatpush1.bf16.msra.mxu0 0
    %447 = vmatprep.subr.bf16.mxu0 0
    %448 = vmatpush1.bf16.msra.mxu0 0
    %449 = vmatprep.subr.bf16.mxu0 0
    %450 = vmatpush1.bf16.msra.mxu0 0
    %451 = vmatprep.subr.bf16.mxu0 0
    %452 = vmatpush1.bf16.msra.mxu0 0
    %453 = vmatprep.subr.bf16.mxu0 0
    %454 = vmatpush1.bf16.msra.mxu0 0
    %455 = vmatprep.subr.bf16.mxu0 0
    %456 = vmatpush1.bf16.msra.mxu0 0
    %457 = vmatprep.subr.bf16.mxu0 0
    %458 = vmatpush1.bf16.msra.mxu0 0
    %459 = vmatprep.subr.bf16.mxu0 0
    %460 = vmatpush1.bf16.msra.mxu0 0
    %461 = vmatprep.subr.bf16.mxu0 0
    %462 = vmatpush1.bf16.msra.mxu0 0
    %463 = vmatprep.subr.bf16.mxu0 0
    %464 = vmatpush1.bf16.msra.mxu0 0
    %465 = vmatprep.mubr.bf16.mxu0 0
    %466 = vmatmul.mubr.bf16.gmra.mrb[0].mxu0 %v431
    %v467 = vpop.f32.mrb[0].mxu0
    %v468 = vadd.f32 %v426, %v467
    %v469 = vpop.f32.mrb[0].mxu0
    %v470 = vpop.f32.mrb[0].mxu0
    %v471 = vpop.f32.mrb[0].mxu0
    %472 = vdwg.mxu0
    %v473 = vxor.u32 %v468, 2147483648
    %v474 = vmul.f32 %v473, 1.442695
    %v475 = vpow.pop %v474
    %v476 = vadd.f32 %v475, 1.0
    %v477 = vrcp.pop %v476
    %v478 = vmul.f32 1.0, %v477
    %v479 = vtanh.pop %v468
    %v480 = vmul.f32 %v478, %v413
    %482 = vrot.lane.b32.xlu0 %v479, 64
    %v483 = vpop.permute.xlu0 %482
    %v485 = vmul.f32 %v478, %v483
    %487 = vrot.lane.b32.xlu0 %v485, 32
    %v488 = vpop.permute.xlu0 %487
    %v490 = vadd.f32 %v480, %v488
    %v491 = vtanh.pop %v490
    %493 = vrot.lane.b32.xlu0 %v491, 64
    %v494 = vpop.permute.xlu0 %493
    %v496 = vmul.f32 %v478, %v494
    %498 = vrot.lane.b32.xlu0 %v496, 32
    %v499 = vpop.permute.xlu0 %498
    %501 = vst.msk [vmem:[#allocation3 + $0x8] sm:$0x3] %vm192, %v499
    %v502 = vpack.c.bf16 %v496, %v496
    %v503 = vld [vmem:[#allocation2 + $0xa] sm:$0x3]
    %505 = vrot.lane.b32.xlu0 %v502, 32
    %v506 = vpop.permute.xlu0 %505
    %v508 = vsel %vm120, %v506, 0
    %510 = vmatprep.subr.bf16.mxu0 0
    %511 = vmatpush1.bf16.msra.mxu0 %v116
    %512 = vmatprep.subr.bf16.mxu0 0
    %513 = vmatpush1.bf16.msra.mxu0 %v117
    %514 = vmatprep.subr.bf16.mxu0 0
    %515 = vmatpush1.bf16.msra.mxu0 0
    %516 = vmatprep.subr.bf16.mxu0 0
    %517 = vmatpush1.bf16.msra.mxu0 0
    %518 = vmatprep.subr.bf16.mxu0 0
    %519 = vmatpush1.bf16.msra.mxu0 0
    %520 = vmatprep.subr.bf16.mxu0 0
    %521 = vmatpush1.bf16.msra.mxu0 0
    %522 = vmatprep.subr.bf16.mxu0 0
    %523 = vmatpush1.bf16.msra.mxu0 0
    %524 = vmatprep.subr.bf16.mxu0 0
    %525 = vmatpush1.bf16.msra.mxu0 0
    %526 = vmatprep.subr.bf16.mxu0 0
    %527 = vmatpush1.bf16.msra.mxu0 0
    %528 = vmatprep.subr.bf16.mxu0 0
    %529 = vmatpush1.bf16.msra.mxu0 0
    %530 = vmatprep.subr.bf16.mxu0 0
    %531 = vmatpush1.bf16.msra.mxu0 0
    %532 = vmatprep.subr.bf16.mxu0 0
    %533 = vmatpush1.bf16.msra.mxu0 0
    %534 = vmatprep.subr.bf16.mxu0 0
    %535 = vmatpush1.bf16.msra.mxu0 0
    %536 = vmatprep.subr.bf16.mxu0 0
    %537 = vmatpush1.bf16.msra.mxu0 0
    %538 = vmatprep.subr.bf16.mxu0 0
    %539 = vmatpush1.bf16.msra.mxu0 0
    %540 = vmatprep.subr.bf16.mxu0 0
    %541 = vmatpush1.bf16.msra.mxu0 0
    %542 = vmatprep.mubr.bf16.mxu0 0
    %543 = vmatmul.mubr.bf16.gmra.mrb[0].mxu0 %v508
    %v544 = vpop.f32.mrb[0].mxu0
    %v545 = vadd.f32 %v503, %v544
    %v546 = vpop.f32.mrb[0].mxu0
    %v547 = vpop.f32.mrb[0].mxu0
    %v548 = vpop.f32.mrb[0].mxu0
    %549 = vdwg.mxu0
    %v550 = vxor.u32 %v545, 2147483648
    %v551 = vmul.f32 %v550, 1.442695
    %v552 = vpow.pop %v551
    %v553 = vadd.f32 %v552, 1.0
    %v554 = vrcp.pop %v553
    %v555 = vmul.f32 1.0, %v554
    %v556 = vtanh.pop %v545
    %v557 = vmul.f32 %v555, %v490
    %559 = vrot.lane.b32.xlu0 %v556, 64
    %v560 = vpop.permute.xlu0 %559
    %v562 = vmul.f32 %v555, %v560
    %564 = vrot.lane.b32.xlu0 %v562, 32
    %v565 = vpop.permute.xlu0 %564
    %v567 = vadd.f32 %v557, %v565
    %v568 = vtanh.pop %v567
    %570 = vrot.lane.b32.xlu0 %v568, 64
    %v571 = vpop.permute.xlu0 %570
    %v573 = vmul.f32 %v555, %v571
    %575 = vrot.lane.b32.xlu0 %v573, 32
    %v576 = vpop.permute.xlu0 %575
    %578 = vst.msk [vmem:[#allocation3 + $0xa] sm:$0x3] %vm192, %v576
    %v579 = vpack.c.bf16 %v573, %v573
    %v580 = vld [vmem:[#allocation2 + $0xc] sm:$0x3]
    %582 = vrot.lane.b32.xlu0 %v579, 32
    %v583 = vpop.permute.xlu0 %582
    %v585 = vsel %vm120, %v583, 0
    %587 = vmatprep.subr.bf16.mxu0 0
    %588 = vmatpush1.bf16.msra.mxu0 %v116
    %589 = vmatprep.subr.bf16.mxu0 0
    %590 = vmatpush1.bf16.msra.mxu0 %v117
    %591 = vmatprep.subr.bf16.mxu0 0
    %592 = vmatpush1.bf16.msra.mxu0 0
    %593 = vmatprep.subr.bf16.mxu0 0
    %594 = vmatpush1.bf16.msra.mxu0 0
    %595 = vmatprep.subr.bf16.mxu0 0
    %596 = vmatpush1.bf16.msra.mxu0 0
    %597 = vmatprep.subr.bf16.mxu0 0
    %598 = vmatpush1.bf16.msra.mxu0 0
    %599 = vmatprep.subr.bf16.mxu0 0
    %600 = vmatpush1.bf16.msra.mxu0 0
    %601 = vmatprep.subr.bf16.mxu0 0
    %602 = vmatpush1.bf16.msra.mxu0 0
    %603 = vmatprep.subr.bf16.mxu0 0
    %604 = vmatpush1.bf16.msra.mxu0 0
    %605 = vmatprep.subr.bf16.mxu0 0
    %606 = vmatpush1.bf16.msra.mxu0 0
    %607 = vmatprep.subr.bf16.mxu0 0
    %608 = vmatpush1.bf16.msra.mxu0 0
    %609 = vmatprep.subr.bf16.mxu0 0
    %610 = vmatpush1.bf16.msra.mxu0 0
    %611 = vmatprep.subr.bf16.mxu0 0
    %612 = vmatpush1.bf16.msra.mxu0 0
    %613 = vmatprep.subr.bf16.mxu0 0
    %614 = vmatpush1.bf16.msra.mxu0 0
    %615 = vmatprep.subr.bf16.mxu0 0
    %616 = vmatpush1.bf16.msra.mxu0 0
    %617 = vmatprep.subr.bf16.mxu0 0
    %618 = vmatpush1.bf16.msra.mxu0 0
    %619 = vmatprep.mubr.bf16.mxu0 0
    %620 = vmatmul.mubr.bf16.gmra.mrb[0].mxu0 %v585
    %v621 = vpop.f32.mrb[0].mxu0
    %v622 = vadd.f32 %v580, %v621
    %v623 = vpop.f32.mrb[0].mxu0
    %v624 = vpop.f32.mrb[0].mxu0
    %v625 = vpop.f32.mrb[0].mxu0
    %626 = vdwg.mxu0
    %v627 = vxor.u32 %v622, 2147483648
    %v628 = vmul.f32 %v627, 1.442695
    %v629 = vpow.pop %v628
    %v630 = vadd.f32 %v629, 1.0
    %v631 = vrcp.pop %v630
    %v632 = vmul.f32 1.0, %v631
    %v633 = vtanh.pop %v622
    %v634 = vmul.f32 %v632, %v567
    %636 = vrot.lane.b32.xlu0 %v633, 64
    %v637 = vpop.permute.xlu0 %636
    %v639 = vmul.f32 %v632, %v637
    %641 = vrot.lane.b32.xlu0 %v639, 32
    %v642 = vpop.permute.xlu0 %641
    %v644 = vadd.f32 %v634, %v642
    %v645 = vtanh.pop %v644
    %647 = vrot.lane.b32.xlu0 %v645, 64
    %v648 = vpop.permute.xlu0 %647
    %v650 = vmul.f32 %v632, %v648
    %652 = vrot.lane.b32.xlu0 %v650, 32
    %v653 = vpop.permute.xlu0 %652
    %655 = vst.msk [vmem:[#allocation3 + $0xc] sm:$0x3] %vm192, %v653
    %v656 = vpack.c.bf16 %v650, %v650
    %v657 = vld [vmem:[#allocation2 + $0xe] sm:$0x3]
    %659 = vrot.lane.b32.xlu0 %v656, 32
    %v660 = vpop.permute.xlu0 %659
    %v662 = vsel %vm120, %v660, 0
    %664 = vmatprep.subr.bf16.mxu0 0
    %665 = vmatpush1.bf16.msra.mxu0 %v116
    %666 = vmatprep.subr.bf16.mxu0 0
    %667 = vmatpush1.bf16.msra.mxu0 %v117
    %668 = vmatprep.subr.bf16.mxu0 0
    %669 = vmatpush1.bf16.msra.mxu0 0
    %670 = vmatprep.subr.bf16.mxu0 0
    %671 = vmatpush1.bf16.msra.mxu0 0
    %672 = vmatprep.subr.bf16.mxu0 0
    %673 = vmatpush1.bf16.msra.mxu0 0
    %674 = vmatprep.subr.bf16.mxu0 0
    %675 = vmatpush1.bf16.msra.mxu0 0
    %676 = vmatprep.subr.bf16.mxu0 0
    %677 = vmatpush1.bf16.msra.mxu0 0
    %678 = vmatprep.subr.bf16.mxu0 0
    %679 = vmatpush1.bf16.msra.mxu0 0
    %680 = vmatprep.subr.bf16.mxu0 0
    %681 = vmatpush1.bf16.msra.mxu0 0
    %682 = vmatprep.subr.bf16.mxu0 0
    %683 = vmatpush1.bf16.msra.mxu0 0
    %684 = vmatprep.subr.bf16.mxu0 0
    %685 = vmatpush1.bf16.msra.mxu0 0
    %686 = vmatprep.subr.bf16.mxu0 0
    %687 = vmatpush1.bf16.msra.mxu0 0
    %688 = vmatprep.subr.bf16.mxu0 0
    %689 = vmatpush1.bf16.msra.mxu0 0
    %690 = vmatprep.subr.bf16.mxu0 0
    %691 = vmatpush1.bf16.msra.mxu0 0
    %692 = vmatprep.subr.bf16.mxu0 0
    %693 = vmatpush1.bf16.msra.mxu0 0
    %694 = vmatprep.subr.bf16.mxu0 0
    %695 = vmatpush1.bf16.msra.mxu0 0
    %696 = vmatprep.mubr.bf16.mxu0 0
    %697 = vmatmul.mubr.bf16.gmra.mrb[0].mxu0 %v662
    %v698 = vpop.f32.mrb[0].mxu0
    %v699 = vadd.f32 %v657, %v698
    %v700 = vpop.f32.mrb[0].mxu0
    %v701 = vpop.f32.mrb[0].mxu0
    %v702 = vpop.f32.mrb[0].mxu0
    %703 = vdwg.mxu0
    %v704 = vxor.u32 %v699, 2147483648
    %v705 = vmul.f32 %v704, 1.442695
    %v706 = vpow.pop %v705
    %v707 = vadd.f32 %v706, 1.0
    %v708 = vrcp.pop %v707
    %v709 = vmul.f32 1.0, %v708
    %v710 = vtanh.pop %v699
    %v711 = vmul.f32 %v709, %v644
    %713 = vrot.lane.b32.xlu0 %v710, 64
    %v714 = vpop.permute.xlu0 %713
    %v716 = vmul.f32 %v709, %v714
    %718 = vrot.lane.b32.xlu0 %v716, 32
    %v719 = vpop.permute.xlu0 %718
    %v721 = vadd.f32 %v711, %v719
    %v722 = vtanh.pop %v721
    %724 = vrot.lane.b32.xlu0 %v722, 64
    %v725 = vpop.permute.xlu0 %724
    %v727 = vmul.f32 %v709, %v725
    %729 = vrot.lane.b32.xlu0 %v727, 32
    %v730 = vpop.permute.xlu0 %729
    %732 = vst.msk [vmem:[#allocation3 + $0xe] sm:$0x3] %vm192, %v730
    %v733 = vld [vmem:[#allocation3] sm:$0xff]
    %v734 = vld [vmem:[#allocation3 + $0x8] sm:$0xff]
    %v735 = vpack.c.bf16 %v734, %v733
    %v736 = vld [vmem:[%s2] sm:$0xf]
    %v737 = vld [vmem:[%s2 + $0x4] sm:$0xf]
    %v738 = vld [vmem:[%s2 + $0x8] sm:$0xf]
    %v739 = vld [vmem:[%s2 + $0xc] sm:$0xf]
    %s740 = scalar_lea.vmem %s4, 1
    %v741 = vld [vmem:[%s740] sm:$0x1]
    %v743 = vlaneseq
    %v744 = vshrl.u32 %v743, 7
    %v745 = vsub.s32 0, %v744
    %v746 = vrot.slane %v741, %v745
    %v752 = vunpack.c.l.b16 %v736
    %v753 = vunpack.c.l.b16 %v737
    %v754 = vunpack.c.l.b16 %v738
    %v755 = vunpack.c.l.b16 %v739
    %v756 = vpack.c.b16 %v753, %v752
    %v757 = vpack.c.b16 %v755, %v754
    %v761 = vsel %vm120, %v735, 0
    %763 = vmatprep.subr.bf16.mxu0 0
    %764 = vmatpush1.bf16.msra.mxu0 %v756
    %765 = vmatprep.subr.bf16.mxu0 0
    %766 = vmatpush1.bf16.msra.mxu0 %v757
    %767 = vmatprep.subr.bf16.mxu0 0
    %768 = vmatpush1.bf16.msra.mxu0 0
    %769 = vmatprep.subr.bf16.mxu0 0
    %770 = vmatpush1.bf16.msra.mxu0 0
    %771 = vmatprep.subr.bf16.mxu0 0
    %772 = vmatpush1.bf16.msra.mxu0 0
    %773 = vmatprep.subr.bf16.mxu0 0
    %774 = vmatpush1.bf16.msra.mxu0 0
    %775 = vmatprep.subr.bf16.mxu0 0
    %776 = vmatpush1.bf16.msra.mxu0 0
    %777 = vmatprep.subr.bf16.mxu0 0
    %778 = vmatpush1.bf16.msra.mxu0 0
    %779 = vmatprep.subr.bf16.mxu0 0
    %780 = vmatpush1.bf16.msra.mxu0 0
    %781 = vmatprep.subr.bf16.mxu0 0
    %782 = vmatpush1.bf16.msra.mxu0 0
    %783 = vmatprep.subr.bf16.mxu0 0
    %784 = vmatpush1.bf16.msra.mxu0 0
    %785 = vmatprep.subr.bf16.mxu0 0
    %786 = vmatpush1.bf16.msra.mxu0 0
    %787 = vmatprep.subr.bf16.mxu0 0
    %788 = vmatpush1.bf16.msra.mxu0 0
    %789 = vmatprep.subr.bf16.mxu0 0
    %790 = vmatpush1.bf16.msra.mxu0 0
    %791 = vmatprep.subr.bf16.mxu0 0
    %792 = vmatpush1.bf16.msra.mxu0 0
    %793 = vmatprep.subr.bf16.mxu0 0
    %794 = vmatpush1.bf16.msra.mxu0 0
    %795 = vmatprep.mubr.bf16.mxu0 0
    %796 = vmatmul.mubr.bf16.gmra.mrb[0].mxu0 %v761
    %v797 = vpop.f32.mrb[0].mxu0
    %v798 = vadd.f32 %v746, %v797
    %v799 = vpop.f32.mrb[0].mxu0
    %v800 = vpop.f32.mrb[0].mxu0
    %v801 = vadd.f32 %v746, %v800
    %v802 = vpop.f32.mrb[0].mxu0
    %803 = vdwg.mxu0
    %804 = vst [vmem:[#allocation2] sm:$0xff] %v798
    %805 = vst [vmem:[#allocation2 + $0x8] sm:$0xff] %v801
    %s806 = scalar_lea.vmem %s3, 16
    %v807 = vld [vmem:[%s806] sm:$0xf]
    %v808 = vld [vmem:[%s806 + $0x4] sm:$0xf]
    %v809 = vld [vmem:[%s806 + $0x8] sm:$0xf]
    %v810 = vld [vmem:[%s806 + $0xc] sm:$0xf]
    %v811 = vld [vmem:[#allocation2] sm:$0x3]
    %v816 = vunpack.c.l.b16 %v807
    %v817 = vunpack.c.l.b16 %v808
    %v818 = vunpack.c.l.b16 %v809
    %v819 = vunpack.c.l.b16 %v810
    %v820 = vpack.c.b16 %v817, %v816
    %v821 = vpack.c.b16 %v819, %v818
    %824 = vmatprep.subr.bf16.mxu0 0
    %825 = vmatpush1.bf16.msra.mxu0 %v820
    %826 = vmatprep.subr.bf16.mxu0 0
    %827 = vmatpush1.bf16.msra.mxu0 %v821
    %828 = vmatprep.subr.bf16.mxu0 0
    %829 = vmatpush1.bf16.msra.mxu0 0
    %830 = vmatprep.subr.bf16.mxu0 0
    %831 = vmatpush1.bf16.msra.mxu0 0
    %832 = vmatprep.subr.bf16.mxu0 0
    %833 = vmatpush1.bf16.msra.mxu0 0
    %834 = vmatprep.subr.bf16.mxu0 0
    %835 = vmatpush1.bf16.msra.mxu0 0
    %836 = vmatprep.subr.bf16.mxu0 0
    %837 = vmatpush1.bf16.msra.mxu0 0
    %838 = vmatprep.subr.bf16.mxu0 0
    %839 = vmatpush1.bf16.msra.mxu0 0
    %840 = vmatprep.subr.bf16.mxu0 0
    %841 = vmatpush1.bf16.msra.mxu0 0
    %842 = vmatprep.subr.bf16.mxu0 0
    %843 = vmatpush1.bf16.msra.mxu0 0
    %844 = vmatprep.subr.bf16.mxu0 0
    %845 = vmatpush1.bf16.msra.mxu0 0
    %846 = vmatprep.subr.bf16.mxu0 0
    %847 = vmatpush1.bf16.msra.mxu0 0
    %848 = vmatprep.subr.bf16.mxu0 0
    %849 = vmatpush1.bf16.msra.mxu0 0
    %850 = vmatprep.subr.bf16.mxu0 0
    %851 = vmatpush1.bf16.msra.mxu0 0
    %852 = vmatprep.subr.bf16.mxu0 0
    %853 = vmatpush1.bf16.msra.mxu0 0
    %854 = vmatprep.subr.bf16.mxu0 0
    %855 = vmatpush1.bf16.msra.mxu0 0
    %856 = vmatprep.mubr.bf16.mxu0 0
    %857 = vmatmul.mubr.bf16.gmra.mrb[0].mxu0 %v122
    %v858 = vpop.f32.mrb[0].mxu0
    %v859 = vadd.f32 %v811, %v858
    %v860 = vpop.f32.mrb[0].mxu0
    %v861 = vpop.f32.mrb[0].mxu0
    %v862 = vpop.f32.mrb[0].mxu0
    %863 = vdwg.mxu0
    %v864 = vxor.u32 %v859, 2147483648
    %v865 = vmul.f32 %v864, 1.442695
    %v866 = vpow.pop %v865
    %v867 = vadd.f32 %v866, 1.0
    %v868 = vrcp.pop %v867
    %v869 = vmul.f32 1.0, %v868
    %v870 = vtanh.pop %v859
    %v871 = vmul.f32 %v869, 0.0
    %873 = vrot.lane.b32.xlu0 %v870, 64
    %v874 = vpop.permute.xlu0 %873
    %v876 = vmul.f32 %v869, %v874
    %878 = vrot.lane.b32.xlu0 %v876, 32
    %v879 = vpop.permute.xlu0 %878
    %v881 = vadd.f32 %v871, %v879
    %v882 = vtanh.pop %v881
    %884 = vrot.lane.b32.xlu0 %v882, 64
    %v885 = vpop.permute.xlu0 %884
    %v887 = vmul.f32 %v869, %v885
    %v888 = vpack.c.bf16 %v887, %v887
    %v889 = vld [vmem:[#allocation2 + $0x2] sm:$0x3]
    %891 = vrot.lane.b32.xlu0 %v888, 32
    %v892 = vpop.permute.xlu0 %891
    %v894 = vsel %vm120, %v892, 0
    %896 = vmatprep.subr.bf16.mxu0 0
    %897 = vmatpush1.bf16.msra.mxu0 %v820
    %898 = vmatprep.subr.bf16.mxu0 0
    %899 = vmatpush1.bf16.msra.mxu0 %v821
    %900 = vmatprep.subr.bf16.mxu0 0
    %901 = vmatpush1.bf16.msra.mxu0 0
    %902 = vmatprep.subr.bf16.mxu0 0
    %903 = vmatpush1.bf16.msra.mxu0 0
    %904 = vmatprep.subr.bf16.mxu0 0
    %905 = vmatpush1.bf16.msra.mxu0 0
    %906 = vmatprep.subr.bf16.mxu0 0
    %907 = vmatpush1.bf16.msra.mxu0 0
    %908 = vmatprep.subr.bf16.mxu0 0
    %909 = vmatpush1.bf16.msra.mxu0 0
    %910 = vmatprep.subr.bf16.mxu0 0
    %911 = vmatpush1.bf16.msra.mxu0 0
    %912 = vmatprep.subr.bf16.mxu0 0
    %913 = vmatpush1.bf16.msra.mxu0 0
    %914 = vmatprep.subr.bf16.mxu0 0
    %915 = vmatpush1.bf16.msra.mxu0 0
    %916 = vmatprep.subr.bf16.mxu0 0
    %917 = vmatpush1.bf16.msra.mxu0 0
    %918 = vmatprep.subr.bf16.mxu0 0
    %919 = vmatpush1.bf16.msra.mxu0 0
    %920 = vmatprep.subr.bf16.mxu0 0
    %921 = vmatpush1.bf16.msra.mxu0 0
    %922 = vmatprep.subr.bf16.mxu0 0
    %923 = vmatpush1.bf16.msra.mxu0 0
    %924 = vmatprep.subr.bf16.mxu0 0
    %925 = vmatpush1.bf16.msra.mxu0 0
    %926 = vmatprep.subr.bf16.mxu0 0
    %927 = vmatpush1.bf16.msra.mxu0 0
    %928 = vmatprep.mubr.bf16.mxu0 0
    %929 = vmatmul.mubr.bf16.gmra.mrb[0].mxu0 %v894
    %v930 = vpop.f32.mrb[0].mxu0
    %v931 = vadd.f32 %v889, %v930
    %v932 = vpop.f32.mrb[0].mxu0
    %v933 = vpop.f32.mrb[0].mxu0
    %v934 = vpop.f32.mrb[0].mxu0
    %935 = vdwg.mxu0
    %v936 = vxor.u32 %v931, 2147483648
    %v937 = vmul.f32 %v936, 1.442695
    %v938 = vpow.pop %v937
    %v939 = vadd.f32 %v938, 1.0
    %v940 = vrcp.pop %v939
    %v941 = vmul.f32 1.0, %v940
    %v942 = vtanh.pop %v931
    %v943 = vmul.f32 %v941, %v881
    %945 = vrot.lane.b32.xlu0 %v942, 64
    %v946 = vpop.permute.xlu0 %945
    %v948 = vmul.f32 %v941, %v946
    %950 = vrot.lane.b32.xlu0 %v948, 32
    %v951 = vpop.permute.xlu0 %950
    %v953 = vadd.f32 %v943, %v951
    %v954 = vtanh.pop %v953
    %956 = vrot.lane.b32.xlu0 %v954, 64
    %v957 = vpop.permute.xlu0 %956
    %v959 = vmul.f32 %v941, %v957
    %v960 = vpack.c.bf16 %v959, %v959
    %v961 = vld [vmem:[#allocation2 + $0x4] sm:$0x3]
    %963 = vrot.lane.b32.xlu0 %v960, 32
    %v964 = vpop.permute.xlu0 %963
    %v966 = vsel %vm120, %v964, 0
    %968 = vmatprep.subr.bf16.mxu0 0
    %969 = vmatpush1.bf16.msra.mxu0 %v820
    %970 = vmatprep.subr.bf16.mxu0 0
    %971 = vmatpush1.bf16.msra.mxu0 %v821
    %972 = vmatprep.subr.bf16.mxu0 0
    %973 = vmatpush1.bf16.msra.mxu0 0
    %974 = vmatprep.subr.bf16.mxu0 0
    %975 = vmatpush1.bf16.msra.mxu0 0
    %976 = vmatprep.subr.bf16.mxu0 0
    %977 = vmatpush1.bf16.msra.mxu0 0
    %978 = vmatprep.subr.bf16.mxu0 0
    %979 = vmatpush1.bf16.msra.mxu0 0
    %980 = vmatprep.subr.bf16.mxu0 0
    %981 = vmatpush1.bf16.msra.mxu0 0
    %982 = vmatprep.subr.bf16.mxu0 0
    %983 = vmatpush1.bf16.msra.mxu0 0
    %984 = vmatprep.subr.bf16.mxu0 0
    %985 = vmatpush1.bf16.msra.mxu0 0
    %986 = vmatprep.subr.bf16.mxu0 0
    %987 = vmatpush1.bf16.msra.mxu0 0
    %988 = vmatprep.subr.bf16.mxu0 0
    %989 = vmatpush1.bf16.msra.mxu0 0
    %990 = vmatprep.subr.bf16.mxu0 0
    %991 = vmatpush1.bf16.msra.mxu0 0
    %992 = vmatprep.subr.bf16.mxu0 0
    %993 = vmatpush1.bf16.msra.mxu0 0
    %994 = vmatprep.subr.bf16.mxu0 0
    %995 = vmatpush1.bf16.msra.mxu0 0
    %996 = vmatprep.subr.bf16.mxu0 0
    %997 = vmatpush1.bf16.msra.mxu0 0
    %998 = vmatprep.subr.bf16.mxu0 0
    %999 = vmatpush1.bf16.msra.mxu0 0
    %1000 = vmatprep.mubr.bf16.mxu0 0
    %1001 = vmatmul.mubr.bf16.gmra.mrb[0].mxu0 %v966
    %v1002 = vpop.f32.mrb[0].mxu0
    %v1003 = vadd.f32 %v961, %v1002
    %v1004 = vpop.f32.mrb[0].mxu0
    %v1005 = vpop.f32.mrb[0].mxu0
    %v1006 = vpop.f32.mrb[0].mxu0
    %1007 = vdwg.mxu0
    %v1008 = vxor.u32 %v1003, 2147483648
    %v1009 = vmul.f32 %v1008, 1.442695
    %v1010 = vpow.pop %v1009
    %v1011 = vadd.f32 %v1010, 1.0
    %v1012 = vrcp.pop %v1011
    %v1013 = vmul.f32 1.0, %v1012
    %v1014 = vtanh.pop %v1003
    %v1015 = vmul.f32 %v1013, %v953
    %1017 = vrot.lane.b32.xlu0 %v1014, 64
    %v1018 = vpop.permute.xlu0 %1017
    %v1020 = vmul.f32 %v1013, %v1018
    %1022 = vrot.lane.b32.xlu0 %v1020, 32
    %v1023 = vpop.permute.xlu0 %1022
    %v1025 = vadd.f32 %v1015, %v1023
    %v1026 = vtanh.pop %v1025
    %1028 = vrot.lane.b32.xlu0 %v1026, 64
    %v1029 = vpop.permute.xlu0 %1028
    %v1031 = vmul.f32 %v1013, %v1029
    %v1032 = vpack.c.bf16 %v1031, %v1031
    %v1033 = vld [vmem:[#allocation2 + $0x6] sm:$0x3]
    %1035 = vrot.lane.b32.xlu0 %v1032, 32
    %v1036 = vpop.permute.xlu0 %1035
    %v1038 = vsel %vm120, %v1036, 0
    %1040 = vmatprep.subr.bf16.mxu0 0
    %1041 = vmatpush1.bf16.msra.mxu0 %v820
    %1042 = vmatprep.subr.bf16.mxu0 0
    %1043 = vmatpush1.bf16.msra.mxu0 %v821
    %1044 = vmatprep.subr.bf16.mxu0 0
    %1045 = vmatpush1.bf16.msra.mxu0 0
    %1046 = vmatprep.subr.bf16.mxu0 0
    %1047 = vmatpush1.bf16.msra.mxu0 0
    %1048 = vmatprep.subr.bf16.mxu0 0
    %1049 = vmatpush1.bf16.msra.mxu0 0
    %1050 = vmatprep.subr.bf16.mxu0 0
    %1051 = vmatpush1.bf16.msra.mxu0 0
    %1052 = vmatprep.subr.bf16.mxu0 0
    %1053 = vmatpush1.bf16.msra.mxu0 0
    %1054 = vmatprep.subr.bf16.mxu0 0
    %1055 = vmatpush1.bf16.msra.mxu0 0
    %1056 = vmatprep.subr.bf16.mxu0 0
    %1057 = vmatpush1.bf16.msra.mxu0 0
    %1058 = vmatprep.subr.bf16.mxu0 0
    %1059 = vmatpush1.bf16.msra.mxu0 0
    %1060 = vmatprep.subr.bf16.mxu0 0
    %1061 = vmatpush1.bf16.msra.mxu0 0
    %1062 = vmatprep.subr.bf16.mxu0 0
    %1063 = vmatpush1.bf16.msra.mxu0 0
    %1064 = vmatprep.subr.bf16.mxu0 0
    %1065 = vmatpush1.bf16.msra.mxu0 0
    %1066 = vmatprep.subr.bf16.mxu0 0
    %1067 = vmatpush1.bf16.msra.mxu0 0
    %1068 = vmatprep.subr.bf16.mxu0 0
    %1069 = vmatpush1.bf16.msra.mxu0 0
    %1070 = vmatprep.subr.bf16.mxu0 0
    %1071 = vmatpush1.bf16.msra.mxu0 0
    %1072 = vmatprep.mubr.bf16.mxu0 0
    %1073 = vmatmul.mubr.bf16.gmra.mrb[0].mxu0 %v1038
    %v1074 = vpop.f32.mrb[0].mxu0
    %v1075 = vadd.f32 %v1033, %v1074
    %v1076 = vpop.f32.mrb[0].mxu0
    %v1077 = vpop.f32.mrb[0].mxu0
    %v1078 = vpop.f32.mrb[0].mxu0
    %1079 = vdwg.mxu0
    %v1080 = vxor.u32 %v1075, 2147483648
    %v1081 = vmul.f32 %v1080, 1.442695
    %v1082 = vpow.pop %v1081
    %v1083 = vadd.f32 %v1082, 1.0
    %v1084 = vrcp.pop %v1083
    %v1085 = vmul.f32 1.0, %v1084
    %v1086 = vtanh.pop %v1075
    %v1087 = vmul.f32 %v1085, %v1025
    %1089 = vrot.lane.b32.xlu0 %v1086, 64
    %v1090 = vpop.permute.xlu0 %1089
    %v1092 = vmul.f32 %v1085, %v1090
    %1094 = vrot.lane.b32.xlu0 %v1092, 32
    %v1095 = vpop.permute.xlu0 %1094
    %v1097 = vadd.f32 %v1087, %v1095
    %v1098 = vtanh.pop %v1097
    %1100 = vrot.lane.b32.xlu0 %v1098, 64
    %v1101 = vpop.permute.xlu0 %1100
    %v1103 = vmul.f32 %v1085, %v1101
    %v1104 = vpack.c.bf16 %v1103, %v1103
    %v1105 = vld [vmem:[#allocation2 + $0x8] sm:$0x3]
    %1107 = vrot.lane.b32.xlu0 %v1104, 32
    %v1108 = vpop.permute.xlu0 %1107
    %v1110 = vsel %vm120, %v1108, 0
    %1112 = vmatprep.subr.bf16.mxu0 0
    %1113 = vmatpush1.bf16.msra.mxu0 %v820
    %1114 = vmatprep.subr.bf16.mxu0 0
    %1115 = vmatpush1.bf16.msra.mxu0 %v821
    %1116 = vmatprep.subr.bf16.mxu0 0
    %1117 = vmatpush1.bf16.msra.mxu0 0
    %1118 = vmatprep.subr.bf16.mxu0 0
    %1119 = vmatpush1.bf16.msra.mxu0 0
    %1120 = vmatprep.subr.bf16.mxu0 0
    %1121 = vmatpush1.bf16.msra.mxu0 0
    %1122 = vmatprep.subr.bf16.mxu0 0
    %1123 = vmatpush1.bf16.msra.mxu0 0
    %1124 = vmatprep.subr.bf16.mxu0 0
    %1125 = vmatpush1.bf16.msra.mxu0 0
    %1126 = vmatprep.subr.bf16.mxu0 0
    %1127 = vmatpush1.bf16.msra.mxu0 0
    %1128 = vmatprep.subr.bf16.mxu0 0
    %1129 = vmatpush1.bf16.msra.mxu0 0
    %1130 = vmatprep.subr.bf16.mxu0 0
    %1131 = vmatpush1.bf16.msra.mxu0 0
    %1132 = vmatprep.subr.bf16.mxu0 0
    %1133 = vmatpush1.bf16.msra.mxu0 0
    %1134 = vmatprep.subr.bf16.mxu0 0
    %1135 = vmatpush1.bf16.msra.mxu0 0
    %1136 = vmatprep.subr.bf16.mxu0 0
    %1137 = vmatpush1.bf16.msra.mxu0 0
    %1138 = vmatprep.subr.bf16.mxu0 0
    %1139 = vmatpush1.bf16.msra.mxu0 0
    %1140 = vmatprep.subr.bf16.mxu0 0
    %1141 = vmatpush1.bf16.msra.mxu0 0
    %1142 = vmatprep.subr.bf16.mxu0 0
    %1143 = vmatpush1.bf16.msra.mxu0 0
    %1144 = vmatprep.mubr.bf16.mxu0 0
    %1145 = vmatmul.mubr.bf16.gmra.mrb[0].mxu0 %v1110
    %v1146 = vpop.f32.mrb[0].mxu0
    %v1147 = vadd.f32 %v1105, %v1146
    %v1148 = vpop.f32.mrb[0].mxu0
    %v1149 = vpop.f32.mrb[0].mxu0
    %v1150 = vpop.f32.mrb[0].mxu0
    %1151 = vdwg.mxu0
    %v1152 = vxor.u32 %v1147, 2147483648
    %v1153 = vmul.f32 %v1152, 1.442695
    %v1154 = vpow.pop %v1153
    %v1155 = vadd.f32 %v1154, 1.0
    %v1156 = vrcp.pop %v1155
    %v1157 = vmul.f32 1.0, %v1156
    %v1158 = vtanh.pop %v1147
    %v1159 = vmul.f32 %v1157, %v1097
    %1161 = vrot.lane.b32.xlu0 %v1158, 64
    %v1162 = vpop.permute.xlu0 %1161
    %v1164 = vmul.f32 %v1157, %v1162
    %1166 = vrot.lane.b32.xlu0 %v1164, 32
    %v1167 = vpop.permute.xlu0 %1166
    %v1169 = vadd.f32 %v1159, %v1167
    %v1170 = vtanh.pop %v1169
    %1172 = vrot.lane.b32.xlu0 %v1170, 64
    %v1173 = vpop.permute.xlu0 %1172
    %v1175 = vmul.f32 %v1157, %v1173
    %v1176 = vpack.c.bf16 %v1175, %v1175
    %v1177 = vld [vmem:[#allocation2 + $0xa] sm:$0x3]
    %1179 = vrot.lane.b32.xlu0 %v1176, 32
    %v1180 = vpop.permute.xlu0 %1179
    %v1182 = vsel %vm120, %v1180, 0
    %1184 = vmatprep.subr.bf16.mxu0 0
    %1185 = vmatpush1.bf16.msra.mxu0 %v820
    %1186 = vmatprep.subr.bf16.mxu0 0
    %1187 = vmatpush1.bf16.msra.mxu0 %v821
    %1188 = vmatprep.subr.bf16.mxu0 0
    %1189 = vmatpush1.bf16.msra.mxu0 0
    %1190 = vmatprep.subr.bf16.mxu0 0
    %1191 = vmatpush1.bf16.msra.mxu0 0
    %1192 = vmatprep.subr.bf16.mxu0 0
    %1193 = vmatpush1.bf16.msra.mxu0 0
    %1194 = vmatprep.subr.bf16.mxu0 0
    %1195 = vmatpush1.bf16.msra.mxu0 0
    %1196 = vmatprep.subr.bf16.mxu0 0
    %1197 = vmatpush1.bf16.msra.mxu0 0
    %1198 = vmatprep.subr.bf16.mxu0 0
    %1199 = vmatpush1.bf16.msra.mxu0 0
    %1200 = vmatprep.subr.bf16.mxu0 0
    %1201 = vmatpush1.bf16.msra.mxu0 0
    %1202 = vmatprep.subr.bf16.mxu0 0
    %1203 = vmatpush1.bf16.msra.mxu0 0
    %1204 = vmatprep.subr.bf16.mxu0 0
    %1205 = vmatpush1.bf16.msra.mxu0 0
    %1206 = vmatprep.subr.bf16.mxu0 0
    %1207 = vmatpush1.bf16.msra.mxu0 0
    %1208 = vmatprep.subr.bf16.mxu0 0
    %1209 = vmatpush1.bf16.msra.mxu0 0
    %1210 = vmatprep.subr.bf16.mxu0 0
    %1211 = vmatpush1.bf16.msra.mxu0 0
    %1212 = vmatprep.subr.bf16.mxu0 0
    %1213 = vmatpush1.bf16.msra.mxu0 0
    %1214 = vmatprep.subr.bf16.mxu0 0
    %1215 = vmatpush1.bf16.msra.mxu0 0
    %1216 = vmatprep.mubr.bf16.mxu0 0
    %1217 = vmatmul.mubr.bf16.gmra.mrb[0].mxu0 %v1182
    %v1218 = vpop.f32.mrb[0].mxu0
    %v1219 = vadd.f32 %v1177, %v1218
    %v1220 = vpop.f32.mrb[0].mxu0
    %v1221 = vpop.f32.mrb[0].mxu0
    %v1222 = vpop.f32.mrb[0].mxu0
    %1223 = vdwg.mxu0
    %v1224 = vxor.u32 %v1219, 2147483648
    %v1225 = vmul.f32 %v1224, 1.442695
    %v1226 = vpow.pop %v1225
    %v1227 = vadd.f32 %v1226, 1.0
    %v1228 = vrcp.pop %v1227
    %v1229 = vmul.f32 1.0, %v1228
    %v1230 = vtanh.pop %v1219
    %v1231 = vmul.f32 %v1229, %v1169
    %1233 = vrot.lane.b32.xlu0 %v1230, 64
    %v1234 = vpop.permute.xlu0 %1233
    %v1236 = vmul.f32 %v1229, %v1234
    %1238 = vrot.lane.b32.xlu0 %v1236, 32
    %v1239 = vpop.permute.xlu0 %1238
    %v1241 = vadd.f32 %v1231, %v1239
    %v1242 = vtanh.pop %v1241
    %1244 = vrot.lane.b32.xlu0 %v1242, 64
    %v1245 = vpop.permute.xlu0 %1244
    %v1247 = vmul.f32 %v1229, %v1245
    %v1248 = vpack.c.bf16 %v1247, %v1247
    %v1249 = vld [vmem:[#allocation2 + $0xc] sm:$0x3]
    %1251 = vrot.lane.b32.xlu0 %v1248, 32
    %v1252 = vpop.permute.xlu0 %1251
    %v1254 = vsel %vm120, %v1252, 0
    %1256 = vmatprep.subr.bf16.mxu0 0
    %1257 = vmatpush1.bf16.msra.mxu0 %v820
    %1258 = vmatprep.subr.bf16.mxu0 0
    %1259 = vmatpush1.bf16.msra.mxu0 %v821
    %1260 = vmatprep.subr.bf16.mxu0 0
    %1261 = vmatpush1.bf16.msra.mxu0 0
    %1262 = vmatprep.subr.bf16.mxu0 0
    %1263 = vmatpush1.bf16.msra.mxu0 0
    %1264 = vmatprep.subr.bf16.mxu0 0
    %1265 = vmatpush1.bf16.msra.mxu0 0
    %1266 = vmatprep.subr.bf16.mxu0 0
    %1267 = vmatpush1.bf16.msra.mxu0 0
    %1268 = vmatprep.subr.bf16.mxu0 0
    %1269 = vmatpush1.bf16.msra.mxu0 0
    %1270 = vmatprep.subr.bf16.mxu0 0
    %1271 = vmatpush1.bf16.msra.mxu0 0
    %1272 = vmatprep.subr.bf16.mxu0 0
    %1273 = vmatpush1.bf16.msra.mxu0 0
    %1274 = vmatprep.subr.bf16.mxu0 0
    %1275 = vmatpush1.bf16.msra.mxu0 0
    %1276 = vmatprep.subr.bf16.mxu0 0
    %1277 = vmatpush1.bf16.msra.mxu0 0
    %1278 = vmatprep.subr.bf16.mxu0 0
    %1279 = vmatpush1.bf16.msra.mxu0 0
    %1280 = vmatprep.subr.bf16.mxu0 0
    %1281 = vmatpush1.bf16.msra.mxu0 0
    %1282 = vmatprep.subr.bf16.mxu0 0
    %1283 = vmatpush1.bf16.msra.mxu0 0
    %1284 = vmatprep.subr.bf16.mxu0 0
    %1285 = vmatpush1.bf16.msra.mxu0 0
    %1286 = vmatprep.subr.bf16.mxu0 0
    %1287 = vmatpush1.bf16.msra.mxu0 0
    %1288 = vmatprep.mubr.bf16.mxu0 0
    %1289 = vmatmul.mubr.bf16.gmra.mrb[0].mxu0 %v1254
    %v1290 = vpop.f32.mrb[0].mxu0
    %v1291 = vadd.f32 %v1249, %v1290
    %v1292 = vpop.f32.mrb[0].mxu0
    %v1293 = vpop.f32.mrb[0].mxu0
    %v1294 = vpop.f32.mrb[0].mxu0
    %1295 = vdwg.mxu0
    %v1296 = vxor.u32 %v1291, 2147483648
    %v1297 = vmul.f32 %v1296, 1.442695
    %v1298 = vpow.pop %v1297
    %v1299 = vadd.f32 %v1298, 1.0
    %v1300 = vrcp.pop %v1299
    %v1301 = vmul.f32 1.0, %v1300
    %v1302 = vtanh.pop %v1291
    %v1303 = vmul.f32 %v1301, %v1241
    %1305 = vrot.lane.b32.xlu0 %v1302, 64
    %v1306 = vpop.permute.xlu0 %1305
    %v1308 = vmul.f32 %v1301, %v1306
    %1310 = vrot.lane.b32.xlu0 %v1308, 32
    %v1311 = vpop.permute.xlu0 %1310
    %v1313 = vadd.f32 %v1303, %v1311
    %v1314 = vtanh.pop %v1313
    %1316 = vrot.lane.b32.xlu0 %v1314, 64
    %v1317 = vpop.permute.xlu0 %1316
    %v1319 = vmul.f32 %v1301, %v1317
    %v1320 = vpack.c.bf16 %v1319, %v1319
    %v1321 = vld [vmem:[#allocation2 + $0xe] sm:$0x3]
    %1323 = vrot.lane.b32.xlu0 %v1320, 32
    %v1324 = vpop.permute.xlu0 %1323
    %v1326 = vsel %vm120, %v1324, 0
    %1328 = vmatprep.subr.bf16.mxu0 0
    %1329 = vmatpush1.bf16.msra.mxu0 %v820
    %1330 = vmatprep.subr.bf16.mxu0 0
    %1331 = vmatpush1.bf16.msra.mxu0 %v821
    %1332 = vmatprep.subr.bf16.mxu0 0
    %1333 = vmatpush1.bf16.msra.mxu0 0
    %1334 = vmatprep.subr.bf16.mxu0 0
    %1335 = vmatpush1.bf16.msra.mxu0 0
    %1336 = vmatprep.subr.bf16.mxu0 0
    %1337 = vmatpush1.bf16.msra.mxu0 0
    %1338 = vmatprep.subr.bf16.mxu0 0
    %1339 = vmatpush1.bf16.msra.mxu0 0
    %1340 = vmatprep.subr.bf16.mxu0 0
    %1341 = vmatpush1.bf16.msra.mxu0 0
    %1342 = vmatprep.subr.bf16.mxu0 0
    %1343 = vmatpush1.bf16.msra.mxu0 0
    %1344 = vmatprep.subr.bf16.mxu0 0
    %1345 = vmatpush1.bf16.msra.mxu0 0
    %1346 = vmatprep.subr.bf16.mxu0 0
    %1347 = vmatpush1.bf16.msra.mxu0 0
    %1348 = vmatprep.subr.bf16.mxu0 0
    %1349 = vmatpush1.bf16.msra.mxu0 0
    %1350 = vmatprep.subr.bf16.mxu0 0
    %1351 = vmatpush1.bf16.msra.mxu0 0
    %1352 = vmatprep.subr.bf16.mxu0 0
    %1353 = vmatpush1.bf16.msra.mxu0 0
    %1354 = vmatprep.subr.bf16.mxu0 0
    %1355 = vmatpush1.bf16.msra.mxu0 0
    %1356 = vmatprep.subr.bf16.mxu0 0
    %1357 = vmatpush1.bf16.msra.mxu0 0
    %1358 = vmatprep.subr.bf16.mxu0 0
    %1359 = vmatpush1.bf16.msra.mxu0 0
    %1360 = vmatprep.mubr.bf16.mxu0 0
    %1361 = vmatmul.mubr.bf16.gmra.mrb[0].mxu0 %v1326
    %v1362 = vpop.f32.mrb[0].mxu0
    %v1363 = vadd.f32 %v1321, %v1362
    %v1364 = vpop.f32.mrb[0].mxu0
    %v1365 = vpop.f32.mrb[0].mxu0
    %v1366 = vpop.f32.mrb[0].mxu0
    %1367 = vdwg.mxu0
    %v1368 = vxor.u32 %v1363, 2147483648
    %v1369 = vmul.f32 %v1368, 1.442695
    %v1370 = vpow.pop %v1369
    %v1371 = vadd.f32 %v1370, 1.0
    %v1372 = vrcp.pop %v1371
    %v1373 = vmul.f32 1.0, %v1372
    %v1374 = vtanh.pop %v1363
    %v1375 = vmul.f32 %v1373, %v1313
    %1377 = vrot.lane.b32.xlu0 %v1374, 64
    %v1378 = vpop.permute.xlu0 %1377
    %v1380 = vmul.f32 %v1373, %v1378
    %1382 = vrot.lane.b32.xlu0 %v1380, 32
    %v1383 = vpop.permute.xlu0 %1382
    %v1385 = vadd.f32 %v1375, %v1383
    %v1386 = vtanh.pop %v1385
    %1388 = vrot.lane.b32.xlu0 %v1386, 64
    %v1389 = vpop.permute.xlu0 %1388
    %v1391 = vmul.f32 %v1373, %v1389
    %v1392 = vmax.f32 %v1391, 0.0
    %v1393 = vpack.c.bf16 %v1392, %v1392
    %v1394 = vld [vmem:[%s5] sm:$0xf]
    %v1395 = vld [vmem:[%s5 + $0x4] sm:$0xf]
    %v1396 = vld [vmem:[%s5 + $0x8] sm:$0xf]
    %v1397 = vld [vmem:[%s5 + $0xc] sm:$0xf]
    %v1398 = vld [vmem:[%s6] sm:$0x1]
    %v1400 = vlaneseq
    %v1401 = vshrl.u32 %v1400, 7
    %v1402 = vsub.s32 0, %v1401
    %v1403 = vrot.slane %v1398, %v1402
    %1406 = vrot.lane.b32.xlu0 %v1393, 32
    %v1407 = vpop.permute.xlu0 %1406
    %v1412 = vunpack.c.l.b16 %v1394
    %v1413 = vunpack.c.l.b16 %v1395
    %v1414 = vunpack.c.l.b16 %v1396
    %v1415 = vunpack.c.l.b16 %v1397
    %v1416 = vpack.c.b16 %v1413, %v1412
    %v1417 = vpack.c.b16 %v1415, %v1414
    %v1421 = vsel %vm120, %v1407, 0
    %1423 = vmatprep.subr.bf16.mxu0 0
    %1424 = vmatpush1.bf16.msra.mxu0 %v1416
    %1425 = vmatprep.subr.bf16.mxu0 0
    %1426 = vmatpush1.bf16.msra.mxu0 %v1417
    %1427 = vmatprep.subr.bf16.mxu0 0
    %1428 = vmatpush1.bf16.msra.mxu0 0
    %1429 = vmatprep.subr.bf16.mxu0 0
    %1430 = vmatpush1.bf16.msra.mxu0 0
    %1431 = vmatprep.subr.bf16.mxu0 0
    %1432 = vmatpush1.bf16.msra.mxu0 0
    %1433 = vmatprep.subr.bf16.mxu0 0
    %1434 = vmatpush1.bf16.msra.mxu0 0
    %1435 = vmatprep.subr.bf16.mxu0 0
    %1436 = vmatpush1.bf16.msra.mxu0 0
    %1437 = vmatprep.subr.bf16.mxu0 0
    %1438 = vmatpush1.bf16.msra.mxu0 0
    %1439 = vmatprep.subr.bf16.mxu0 0
    %1440 = vmatpush1.bf16.msra.mxu0 0
    %1441 = vmatprep.subr.bf16.mxu0 0
    %1442 = vmatpush1.bf16.msra.mxu0 0
    %1443 = vmatprep.subr.bf16.mxu0 0
    %1444 = vmatpush1.bf16.msra.mxu0 0
    %1445 = vmatprep.subr.bf16.mxu0 0
    %1446 = vmatpush1.bf16.msra.mxu0 0
    %1447 = vmatprep.subr.bf16.mxu0 0
    %1448 = vmatpush1.bf16.msra.mxu0 0
    %1449 = vmatprep.subr.bf16.mxu0 0
    %1450 = vmatpush1.bf16.msra.mxu0 0
    %1451 = vmatprep.subr.bf16.mxu0 0
    %1452 = vmatpush1.bf16.msra.mxu0 0
    %1453 = vmatprep.subr.bf16.mxu0 0
    %1454 = vmatpush1.bf16.msra.mxu0 0
    %1455 = vmatprep.mubr.bf16.mxu0 0
    %1456 = vmatmul.mubr.bf16.gmra.mrb[0].mxu0 %v1421
    %v1457 = vpop.f32.mrb[0].mxu0
    %v1458 = vadd.f32 %v1403, %v1457
    %v1459 = vpop.f32.mrb[0].mxu0
    %v1460 = vpop.f32.mrb[0].mxu0
    %v1461 = vpop.f32.mrb[0].mxu0
    %1462 = vdwg.mxu0
    %v1463 = vmax.f32 %v1458, 0.0
    %v1464 = vpack.c.bf16 %v1463, %v1463
    %v1465 = vld [vmem:[%s7] sm:$0xf]
    %v1466 = vld [vmem:[%s7 + $0x4] sm:$0xf]
    %v1467 = vld [vmem:[%s7 + $0x8] sm:$0xf]
    %v1468 = vld [vmem:[%s7 + $0xc] sm:$0xf]
    %v1469 = vld [vmem:[%s7 + $0x10] sm:$0xf]
    %v1470 = vld [vmem:[%s7 + $0x14] sm:$0xf]
    %v1471 = vld [vmem:[%s7 + $0x18] sm:$0xf]
    %v1472 = vld [vmem:[%s7 + $0x1c] sm:$0xf]
    %v1473 = vld [vmem:[%s8] sm:$0x1]
    %v1475 = vlaneseq
    %v1476 = vshrl.u32 %v1475, 7
    %v1477 = vsub.s32 0, %v1476
    %v1478 = vrot.slane %v1473, %v1477
    %v1488 = vunpack.c.l.b16 %v1465
    %v1489 = vunpack.c.l.b16 %v1466
    %v1490 = vunpack.c.l.b16 %v1467
    %v1491 = vunpack.c.l.b16 %v1468
    %v1492 = vunpack.c.l.b16 %v1469
    %v1493 = vunpack.c.l.b16 %v1470
    %v1494 = vunpack.c.l.b16 %v1471
    %v1495 = vunpack.c.l.b16 %v1472
    %v1496 = vpack.c.b16 %v1489, %v1488
    %v1497 = vpack.c.b16 %v1491, %v1490
    %v1498 = vpack.c.b16 %v1493, %v1492
    %v1499 = vpack.c.b16 %v1495, %v1494
    %vm1504 = vcmask 523264
    %v1506 = vsel %vm1504, %v1464, 0
    %1508 = vmatprep.subr.bf16.mxu0 0
    %1509 = vmatpush1.bf16.msra.mxu0 %v1496
    %1510 = vmatprep.subr.bf16.mxu0 0
    %1511 = vmatpush1.bf16.msra.mxu0 %v1497
    %1512 = vmatprep.subr.bf16.mxu0 0
    %1513 = vmatpush1.bf16.msra.mxu0 %v1498
    %1514 = vmatprep.subr.bf16.mxu0 0
    %1515 = vmatpush1.bf16.msra.mxu0 %v1499
    %1516 = vmatprep.subr.bf16.mxu0 0
    %1517 = vmatpush1.bf16.msra.mxu0 0
    %1518 = vmatprep.subr.bf16.mxu0 0
    %1519 = vmatpush1.bf16.msra.mxu0 0
    %1520 = vmatprep.subr.bf16.mxu0 0
    %1521 = vmatpush1.bf16.msra.mxu0 0
    %1522 = vmatprep.subr.bf16.mxu0 0
    %1523 = vmatpush1.bf16.msra.mxu0 0
    %1524 = vmatprep.subr.bf16.mxu0 0
    %1525 = vmatpush1.bf16.msra.mxu0 0
    %1526 = vmatprep.subr.bf16.mxu0 0
    %1527 = vmatpush1.bf16.msra.mxu0 0
    %1528 = vmatprep.subr.bf16.mxu0 0
    %1529 = vmatpush1.bf16.msra.mxu0 0
    %1530 = vmatprep.subr.bf16.mxu0 0
    %1531 = vmatpush1.bf16.msra.mxu0 0
    %1532 = vmatprep.subr.bf16.mxu0 0
    %1533 = vmatpush1.bf16.msra.mxu0 0
    %1534 = vmatprep.subr.bf16.mxu0 0
    %1535 = vmatpush1.bf16.msra.mxu0 0
    %1536 = vmatprep.subr.bf16.mxu0 0
    %1537 = vmatpush1.bf16.msra.mxu0 0
    %1538 = vmatprep.subr.bf16.mxu0 0
    %1539 = vmatpush1.bf16.msra.mxu0 0
    %1540 = vmatprep.mubr.bf16.mxu0 0
    %1541 = vmatmul.mubr.bf16.gmra.mrb[0].mxu0 %v1506
    %v1542 = vpop.f32.mrb[0].mxu0
    %v1543 = vadd.f32 %v1478, %v1542
    %v1544 = vpop.f32.mrb[0].mxu0
    %v1545 = vpop.f32.mrb[0].mxu0
    %v1546 = vpop.f32.mrb[0].mxu0
    %1547 = vdwg.mxu0
    %vm1548 = vcmask 58368
    %1549 = vst.msk [vmem:[#allocation4] sm:$0x3] %vm1548, %v1543
    // Predicated region
    $region38: #{lstm_forward.1} parent=1 // pred_check
      _
    $region39: #{lstm_forward.1} parent=1 // pred_check_branch
      %1551 = sbr.rel (0) target = $region41
    $region40: #{lstm_forward.1} parent=1 // pred_region
      %s1553 = ssub.s32 32, 32
      %1554 = vsyncadd [#allocation5], %s1553
      %s1556 = sshll.u32 [#allocation4], 4
      %s1557 = int_to_ptr.vmem [resolvable:$true] %s1556
      %1559 = dma.vmem_to_hbm [thread:$0]  %s1557, 32, %s9, [#allocation5]
    $region41: #{lstm_forward.1} parent=1 // pred_fallthru
      _
    // Predicated region
    $region42: #{lstm_forward.1} parent=1 // pred_check
      _
    $region43: #{lstm_forward.1} parent=1 // pred_check_branch
      %1561 = sbr.rel (0) target = $region45
    $region44: #{lstm_forward.1} parent=1 // pred_region
      %1562 = dma.done [#allocation5], 32
    $region45: #{lstm_forward.1} parent=1 // pred_fallthru
      _
    %1563 = vsyncpa [#allocation5], 1

</llo_original>
